<compile_context>
chip_gen: v6e
topology: v6e:2x2x1
jax: 0.10.0
libtpu: 0.0.40
codegen_flags: <defaults>
</compile_context>

<pallas_src>
import functools

import jax
import jax.numpy as jnp
import numpy as np
from jax.experimental import pallas as pl
from jax.experimental.pallas import tpu as pltpu


def _round_up(x, m):
    return ((x + m - 1) // m) * m


def _cdiv(a, b):
    return (a + b - 1) // b


def _vmem_limit(est_bytes):
    # Sized from the actual blocks; floor at the default scoped limit, cap well
    # under v5e/v6e physical VMEM (toy shapes always hit the floor).
    return int(min(96 << 20, max(32 << 20, est_bytes)))


# --------------------------------------------------------------------------
# Pallas kernels
# --------------------------------------------------------------------------
def _conv_kernel(x_ref, w_ref, scale_ref, shift_ref, o_ref, acc_ref, *,
                 kh, kw, stride, th, wot, relu, fold):
    """Direct conv on one (row-tile, K-chunk): fat MXU dots, VMEM accumulator.

    x_ref:  (1, s*s, 1, th+e, pw, kc)  halo'd row tile of the parity planes (bf16)
    w_ref:  (kh, kw*cin, cout) if fold else (kh, kw, kc, cout)   (bf16)
    scale_ref / shift_ref: (1, cout)   folded BN (f32)
    o_ref:  (1, 1, th*wot, cout)
    acc_ref:(th*wot, cout) f32 scratch, persists across the K grid axis.
    """
    s = stride
    kc = x_ref.shape[-1]
    m = th * wot
    nk = pl.num_programs(2)

    @pl.when(pl.program_id(2) == 0)
    def _():
        acc_ref[...] = jnp.zeros_like(acc_ref)

    acc = acc_ref[...]
    for ki in range(kh):
        p, oi = ki % s, ki // s
        if fold:
            # Fold the kw column taps into K (K = kw*kc): one fat dot per row.
            taps = []
            for kj in range(kw):
                q, oj = kj % s, kj // s
                taps.append(x_ref[0, p * s + q, 0, oi:oi + th, oj:oj + wot, :])
            patch = taps[0] if kw == 1 else jnp.concatenate(taps, axis=-1)
            acc = acc + jnp.dot(patch.reshape(m, kw * kc), w_ref[ki],
                                preferred_element_type=jnp.float32)
        else:
            for kj in range(kw):
                q, oj = kj % s, kj // s
                patch = x_ref[0, p * s + q, 0, oi:oi + th, oj:oj + wot, :]
                acc = acc + jnp.dot(patch.reshape(m, kc), w_ref[ki, kj],
                                    preferred_element_type=jnp.float32)
    acc_ref[...] = acc

    @pl.when(pl.program_id(2) == nk - 1)
    def _():
        y = acc * scale_ref[...] + shift_ref[...]
        if relu:
            y = jnp.maximum(y, 0.0)
        o_ref[0, 0] = y.astype(o_ref.dtype)


def conv2d(x, w, scale, shift, *, stride=1, pad=0, relu=False,
           out_dtype=jnp.bfloat16):
    """NHWC conv with folded BN / ReLU.  w: (kh, kw, Cin, Cout) bf16."""
    n, h, win, cin = x.shape
    kh, kw, _, cout = w.shape
    s = stride
    ho = (h + 2 * pad - kh) // s + 1
    wo = (win + 2 * pad - kw) // s + 1
    wot = _round_up(wo, 16)                 # bf16-friendly output width
    e = (kh - 1) // s                       # halo plane rows below each tile
    ew = (kw - 1) // s
    # Row tile: cap MXU M around 4K rows and the f32 accumulator around 4 MiB.
    th = max(1, min(ho, max(1, 4096 // wot),
                    max(1, (4 << 20) // max(1, wot * cout * 4))))
    nt = _cdiv(ho, th)
    ho_p = nt * th
    ph, pw = ho_p + e, wot + ew             # parity-plane dims
    hp, wp = ph * s, pw * s                 # padded input dims

    # Cin chunking (K grid axis): only for very wide inputs; <=512 stays whole.
    if cin <= 512 or cin % 128 != 0:
        kc = cin
    else:
        kc = 256 if cin % 256 == 0 else 128
    nk = cin // kc
    fold = (kw > 1) and (nk == 1)

    xb = x.astype(jnp.bfloat16)
    xb = jnp.pad(xb, ((0, 0),
                      (pad, max(0, hp - h - pad)),
                      (pad, max(0, wp - win - pad)),
                      (0, 0)))[:, :hp, :wp, :]
    # Space-to-depth parity planes: tap (ki,kj) becomes an unstrided slice of
    # plane (ki%s)*s + (kj%s).  For s == 1 this is a free reshape.
    planes = xb.reshape(n, ph, s, pw, s, cin).transpose(0, 2, 4, 1, 3, 5)
    planes = planes.reshape(n, s * s, ph, pw, cin)
    # Halo-duplicated row tiles so each grid step only needs its own rows.
    # TODO(synk): replace with an in-kernel halo DMA (memory_space=pl.ANY).
    if nt == 1:
        tiles = planes[:, :, None]                      # (n, s*s, 1, th+e, pw, cin)
    elif e == 0:
        tiles = planes.reshape(n, s * s, nt, th, pw, cin)
    else:
        ridx = (np.arange(nt)[:, None] * th
                + np.arange(th + e)[None, :]).reshape(-1)
        tiles = jnp.take(planes, jnp.asarray(ridx), axis=2)
        tiles = tiles.reshape(n, s * s, nt, th + e, pw, cin)

    if fold:
        w_in = w.reshape(kh, kw * cin, cout)
        w_spec = pl.BlockSpec((kh, kw * cin, cout), lambda i, t, k: (0, 0, 0))
        w_bytes = kh * kw * cin * cout * 2
    else:
        w_in = w
        w_spec = pl.BlockSpec((kh, kw, kc, cout), lambda i, t, k: (0, 0, k, 0))
        w_bytes = kh * kw * kc * cout * 2

    itemsize = jnp.dtype(out_dtype).itemsize
    est = (2 * ((s * s) * (th + e) * pw * kc * 2 + w_bytes
                + th * wot * cout * itemsize)
           + th * wot * cout * 4
           + 2 * th * wot * kw * kc * 2
           + (8 << 20))

    out = pl.pallas_call(
        functools.partial(_conv_kernel, kh=kh, kw=kw, stride=s, th=th,
                          wot=wot, relu=relu, fold=fold),
        out_shape=jax.ShapeDtypeStruct((n, nt, th * wot, cout), out_dtype),
        grid=(n, nt, nk),
        in_specs=[
            pl.BlockSpec((1, s * s, 1, th + e, pw, kc),
                         lambda i, t, k: (i, 0, t, 0, 0, k)),
            w_spec,
            pl.BlockSpec((1, cout), lambda i, t, k: (0, 0)),
            pl.BlockSpec((1, cout), lambda i, t, k: (0, 0)),
        ],
        out_specs=pl.BlockSpec((1, 1, th * wot, cout),
                               lambda i, t, k: (i, t, 0, 0)),
        scratch_shapes=[pltpu.VMEM((th * wot, cout), jnp.float32)],
        compiler_params=pltpu.CompilerParams(
            dimension_semantics=("parallel", "parallel", "arbitrary"),
            vmem_limit_bytes=_vmem_limit(est)),
    )(tiles, w_in, scale, shift)

    out = out.reshape(n, ho_p, wot, cout)
    if ho_p != ho or wot != wo:
        out = out[:, :ho, :wo, :]
    return out


def _pfn_kernel(x_ref, w_ref, scale_ref, shift_ref, o_ref):
    tv, p, cin = x_ref.shape
    cout = w_ref.shape[1]
    x = x_ref[...].reshape(tv * p, cin)
    y = jnp.dot(x, w_ref[...], preferred_element_type=jnp.float32)
    y = y * scale_ref[...] + shift_ref[...]
    y = jnp.maximum(y, 0.0)
    o_ref[...] = jnp.max(y.reshape(tv, p, cout), axis=1).astype(o_ref.dtype)


def pallas_pfn(feats, w, scale, shift):
    """PFNLayer: Linear(Cin->64, no bias) -> folded BN -> ReLU -> max over pts."""
    v, p, cin = feats.shape
    cout = w.shape[1]
    tv = 64                                  # 64 voxels * 8 points = 512 MXU rows
    vp = _round_up(max(v, 1), tv)
    x = jnp.pad(feats.astype(jnp.bfloat16), ((0, vp - v), (0, 0), (0, 0)))
    out = pl.pallas_call(
        _pfn_kernel,
        out_shape=jax.ShapeDtypeStruct((vp, cout), jnp.bfloat16),
        grid=(vp // tv,),
        in_specs=[
            pl.BlockSpec((tv, p, cin), lambda i: (i, 0, 0)),
            pl.BlockSpec((cin, cout), lambda i: (0, 0)),
            pl.BlockSpec((1, cout), lambda i: (0, 0)),
            pl.BlockSpec((1, cout), lambda i: (0, 0)),
        ],
        out_specs=pl.BlockSpec((tv, cout), lambda i: (i, 0)),
        compiler_params=pltpu.CompilerParams(
            dimension_semantics=("parallel",),
            vmem_limit_bytes=32 << 20),
    )(x, w, scale, shift)
    return out[:v]


def _fuse_kernel(gid_ref, first_ref, x_ref, o_ref):
    a = pl.program_id(1)
    first = first_ref[a] > 0

    @pl.when(first)
    def _():
        o_ref[...] = x_ref[...]

    @pl.when(jnp.logical_not(first))
    def _():
        o_ref[...] = jnp.maximum(o_ref[...], x_ref[...])


def pallas_group_max_fuse(spatial_features, record_len):
    """Simplified raindrop_syncnet fusion: per-sample max over its agents.

    Single pallas_call, grid = (tile, agent) with agent innermost.  The OUTPUT
    block index is keyed by the scalar-prefetched group id, so consecutive
    agents of a sample accumulate (max) into the same resident output block —
    exactly n_agents * n_tiles DMAs, no redundant fetches for padded agents.
    """
    # TODO(synk): raindrop_syncnet's attention / flow-based temporal
    # compensation and pairwise_t_matrix warping are not reproducible without
    # its source; approximated by max fusion over agents within each sample.
    n, h, w, c = spatial_features.shape
    b = len(record_len)
    assert all(r >= 1 for r in record_len)
    total = h * w * c
    rows = _cdiv(total, 128)
    tile_r = min(_round_up(rows, 16), 1024)
    rows_p = _round_up(rows, tile_r)
    x = spatial_features.reshape(n, total)
    if rows_p * 128 > total:
        x = jnp.pad(x, ((0, 0), (0, rows_p * 128 - total)))
    x = x.reshape(n, rows_p, 128)                    # lane-dense view

    gid = np.repeat(np.arange(b, dtype=np.int32),
                    np.asarray(record_len, np.int64))
    starts = np.concatenate([[0], np.cumsum(record_len)[:-1]]).astype(np.int64)
    first = np.zeros((n,), np.int32)
    first[starts] = 1

    out = pl.pallas_call(
        _fuse_kernel,
        out_shape=jax.ShapeDtypeStruct((b, rows_p, 128),
                                       spatial_features.dtype),
        grid_spec=pltpu.PrefetchScalarGridSpec(
            num_scalar_prefetch=2,
            grid=(rows_p // tile_r, n),
            in_specs=[pl.BlockSpec(
                (1, tile_r, 128),
                lambda f, a, gid_ref, first_ref: (a, f, 0))],
            out_specs=pl.BlockSpec(
                (1, tile_r, 128),
                lambda f, a, gid_ref, first_ref: (gid_ref[a], f, 0)),
        ),
        compiler_params=pltpu.CompilerParams(
            dimension_semantics=("parallel", "arbitrary"),
            vmem_limit_bytes=_vmem_limit(8 * tile_r * 128 * 2 + (4 << 20))),
    )(jnp.asarray(gid), jnp.asarray(first), x)
    out = out.reshape(b, rows_p * 128)[:, :total]
    return out.reshape(b, h, w, c)


# --------------------------------------------------------------------------
# XLA glue (pointwise / scatter / relayout only; all matmuls are in Pallas)
# --------------------------------------------------------------------------
def pixel_shuffle(y, k):
    n, h, w, kkc = y.shape
    c = kkc // (k * k)
    y = y.reshape(n, h, w, k, k, c)
    # TODO(synk): fold this relayout into the deconv kernel's out_spec.
    return jnp.transpose(y, (0, 1, 3, 2, 4, 5)).reshape(n, h * k, w * k, c)


def pillar_vfe_features(voxel_features, voxel_coords, voxel_num_points,
                        voxel_size, pc_range):
    """Augment (V,P,4) raw points to (V,P,16) masked PFN inputs (zero-padded)."""
    v, p, _ = voxel_features.shape
    pts_mask = (jnp.arange(p)[None, :] < voxel_num_points[:, None]).astype(
        jnp.float32)
    xyz = voxel_features[..., :3]
    pts_sum = jnp.sum(xyz * pts_mask[..., None], axis=1, keepdims=True)
    denom = jnp.maximum(voxel_num_points, 1).astype(jnp.float32)[:, None, None]
    f_cluster = xyz - pts_sum / denom
    vx, vy, vz = voxel_size
    x0, y0, z0 = pc_range[0], pc_range[1], pc_range[2]
    cx = voxel_coords[:, 3:4].astype(jnp.float32) * vx + (vx / 2 + x0)
    cy = voxel_coords[:, 2:3].astype(jnp.float32) * vy + (vy / 2 + y0)
    cz = voxel_coords[:, 1:2].astype(jnp.float32) * vz + (vz / 2 + z0)
    f_center = jnp.stack([xyz[..., 0] - cx, xyz[..., 1] - cy, xyz[..., 2] - cz],
                         axis=-1)
    feats = jnp.concatenate([voxel_features, f_cluster, f_center,
                             jnp.zeros((v, p, 6), jnp.float32)], axis=-1)
    return feats * pts_mask[..., None]


def point_pillar_scatter(pillar_features, coords, num_agents, c, h, w):
    # TODO(synk): replace the XLA scatter with a Pallas scatter (scalar-
    # prefetched indices + input_output_aliases); duplicate (y,x) pillars
    # resolve by last-write-wins, which may differ from torch scatter ordering.
    canvas = jnp.zeros((num_agents, h * w, c), pillar_features.dtype)
    flat_idx = coords[:, 2] * w + coords[:, 3]
    canvas = canvas.at[coords[:, 0], flat_idx, :].set(pillar_features)
    return canvas.reshape(num_agents, h, w, c)          # NHWC


def base_bev_backbone(x, bb):
    ups = []
    h = x
    for blk, de in zip(bb["blocks"], bb["deblocks"]):
        for layer in blk:
            h = conv2d(h, layer["w"], layer["scale"], layer["shift"],
                       stride=layer["stride"], pad=1, relu=True)
        u = conv2d(h, de["w"], de["scale"], de["shift"],
                   stride=1, pad=0, relu=True)
        if de["k"] > 1:
            u = pixel_shuffle(u, de["k"])
        ups.append(u)
    return jnp.concatenate(ups, axis=-1)                # (N, H/2, W/2, 384)


# --------------------------------------------------------------------------
# Parameter init (deterministic, synthetic); weights stored bf16, BN folded
# into f32 (1, Cout) scale/shift.
# --------------------------------------------------------------------------
class _KeyGen:
    def __init__(self, key):
        self._key = key

    def next(self):
        self._key, sub = jax.random.split(self._key)
        return sub


def _conv_params(kg, kh, kw, cin, cout, stride=1):
    w = (jax.random.normal(kg.next(), (kh, kw, cin, cout), jnp.float32)
         / np.sqrt(kh * kw * cin)).astype(jnp.bfloat16)
    scale = 1.0 + 0.1 * jax.random.normal(kg.next(), (1, cout), jnp.float32)
    shift = 0.1 * jax.random.normal(kg.next(), (1, cout), jnp.float32)
    return {"w": w, "scale": scale, "shift": shift, "stride": stride}


def init_params(key, anchor_number=2):
    kg = _KeyGen(key)
    params = {"anchor_number": anchor_number}

    # PillarVFE PFN: Linear(10 -> 64, bias=False) + BN1d(64).  K padded only to
    # 16 (bf16 sublane) -- the matching activation pad is free in the XLA
    # feature-concat pass.
    w10 = jax.random.normal(kg.next(), (10, 64), jnp.float32) / np.sqrt(10.0)
    params["pfn_w"] = (jnp.zeros((16, 64), jnp.float32)
                       .at[:10].set(w10).astype(jnp.bfloat16))
    params["pfn_scale"] = 1.0 + 0.1 * jax.random.normal(kg.next(), (1, 64),
                                                        jnp.float32)
    params["pfn_shift"] = 0.1 * jax.random.normal(kg.next(), (1, 64),
                                                  jnp.float32)

    # BaseBEVBackbone: layer_nums=[1,1,1], strides=[2,2,2], filters=[64,128,256]
    #                  upsample_strides=[1,2,4], upsample_filters=[128,128,128]
    layer_nums = (1, 1, 1)
    strides = (2, 2, 2)
    filters = (64, 128, 256)
    up_strides = (1, 2, 4)
    up_filters = (128, 128, 128)
    blocks, deblocks = [], []
    c_in = 64
    for bi in range(3):
        c_out = filters[bi]
        convs = [_conv_params(kg, 3, 3, c_in, c_out, stride=strides[bi])]
        for _ in range(layer_nums[bi]):
            convs.append(_conv_params(kg, 3, 3, c_out, c_out, stride=1))
        blocks.append(convs)
        u, uc = up_strides[bi], up_filters[bi]
        if u == 1:
            de = _conv_params(kg, 1, 1, c_out, uc)
            de["k"] = 1
        else:
            # ConvTranspose2d(c_out, uc, u, stride=u) == 1x1 conv to u*u*uc
            # channels + pixel shuffle.
            w = (jax.random.normal(kg.next(), (1, 1, c_out, u * u * uc),
                                   jnp.float32)
                 / np.sqrt(c_out)).astype(jnp.bfloat16)
            scale = 1.0 + 0.1 * jax.random.normal(kg.next(), (1, uc),
                                                  jnp.float32)
            shift = 0.1 * jax.random.normal(kg.next(), (1, uc), jnp.float32)
            de = {"w": w, "scale": jnp.tile(scale, (1, u * u)),
                  "shift": jnp.tile(shift, (1, u * u)), "stride": 1, "k": u}
        deblocks.append(de)
        c_in = c_out
    params["backbone"] = {"blocks": blocks, "deblocks": deblocks}

    # Heads (shrink_flag=False -> 128*3 input channels).  cls & reg fused into
    # one 1x1 conv whose output is padded to 128 lanes (lane-dense stores);
    # real channels are sliced off in XLA.
    c2d = sum(up_filters)
    n_head = anchor_number + 7 * anchor_number
    head_c = 128
    w_h = (jax.random.normal(kg.next(), (1, 1, c2d, n_head), jnp.float32)
           / np.sqrt(c2d))
    params["head_w"] = (jnp.zeros((1, 1, c2d, head_c), jnp.float32)
                        .at[..., :n_head].set(w_h).astype(jnp.bfloat16))
    params["head_scale"] = jnp.ones((1, head_c), jnp.float32)
    shift_h = 0.01 * jax.random.normal(kg.next(), (1, n_head), jnp.float32)
    params["head_shift"] = (jnp.zeros((1, head_c), jnp.float32)
                            .at[:, :n_head].set(shift_h))
    params["n_head"] = n_head
    return params


# --------------------------------------------------------------------------
# Full forward
# --------------------------------------------------------------------------
def forward(params, data_dict, voxel_size, pc_range, grid_hw):
    h, w = grid_hw
    voxel_features = data_dict["voxel_features"]       # (V, P, 4)
    voxel_coords = data_dict["voxel_coords"]           # (V, 4) [b, z, y, x]
    voxel_num_points = data_dict["voxel_num_points"]   # (V,)
    record_len = data_dict["record_len"]               # python tuple (static)
    num_agents = int(sum(record_len))
    anchors = params["anchor_number"]
    n_head = params["n_head"]

    # ---- PillarVFE ----
    feats16 = pillar_vfe_features(voxel_features, voxel_coords,
                                  voxel_num_points, voxel_size, pc_range)
    pillar_feat = pallas_pfn(feats16, params["pfn_w"],
                             params["pfn_scale"], params["pfn_shift"])

    # ---- PointPillarScatter ----
    spatial_features = point_pillar_scatter(pillar_feat, voxel_coords,
                                            num_agents, 64, h, w)

    # ---- rain_fusion (multi_scale), simplified: per-sample max over agents --
    fused_bev = pallas_group_max_fuse(spatial_features, record_len)

    # ---- one BaseBEVBackbone pass on [per-agent maps ; fused maps] ----
    all_bev = jnp.concatenate([spatial_features, fused_bev], axis=0)
    all_2d = base_bev_backbone(all_bev, params["backbone"])
    spatial_features_2d = all_2d[:num_agents]
    fused_feature = all_2d[num_agents:]

    # ---- fused cls/reg heads (single lane-dense 1x1 conv, sliced in XLA) ----
    heads = conv2d(all_2d, params["head_w"], params["head_scale"],
                   params["head_shift"], stride=1, pad=0, relu=False,
                   out_dtype=jnp.float32)[..., :n_head]
    psm_single = heads[:num_agents, :, :, :anchors]
    rm_single = heads[:num_agents, :, :, anchors:]
    psm = heads[num_agents:, :, :, :anchors]
    rm = heads[num_agents:, :, :, anchors:]

    # ---- SyncNet recon-loss stand-in ----
    ego_idx = jnp.asarray([0] + list(np.cumsum(record_len)[:-1]), jnp.int32)
    ego_2d = spatial_features_2d[ego_idx].astype(jnp.float32)
    recon_loss = jnp.mean((fused_feature.astype(jnp.float32) - ego_2d) ** 2)

    return {
        "psm": jnp.transpose(psm, (0, 3, 1, 2)),            # NCHW
        "rm": jnp.transpose(rm, (0, 3, 1, 2)),              # NCHW
        "psm_single": jnp.transpose(psm_single, (0, 3, 1, 2)),
        "rm_single": jnp.transpose(rm_single, (0, 3, 1, 2)),
        "recon_loss": recon_loss,
        "record_len": jnp.asarray(record_len, jnp.int32),
    }


# --------------------------------------------------------------------------
# Main
# --------------------------------------------------------------------------
if __name__ == "__main__":
    key = jax.random.PRNGKey(0)
    k_par, k_pts, k_crd, k_num = jax.random.split(key, 4)

    # Small synthetic scene: B=2 samples, record_len=[2,1] agents, 16x16 BEV.
    record_len = (2, 1)
    num_agents = sum(record_len)
    H = W = 16
    voxel_size = (0.4, 0.4, 4.0)
    pc_range = (0.0, 0.0, -3.0, 6.4, 6.4, 1.0)
    voxels_per_agent = 16
    V = num_agents * voxels_per_agent
    P = 8  # max points per pillar

    params = init_params(k_par, anchor_number=2)

    xyz = jax.random.uniform(k_pts, (V, P, 3), jnp.float32,
                             minval=0.0, maxval=6.4)
    intensity = jax.random.uniform(jax.random.fold_in(k_pts, 1), (V, P, 1),
                                   jnp.float32)
    voxel_features = jnp.concatenate([xyz, intensity], axis=-1)      # (V, P, 4)

    batch_idx = jnp.repeat(jnp.arange(num_agents, dtype=jnp.int32),
                           voxels_per_agent)
    yx = jax.random.randint(k_crd, (V, 2), 0, H, dtype=jnp.int32)
    voxel_coords = jnp.stack([batch_idx, jnp.zeros((V,), jnp.int32),
                              yx[:, 0], yx[:, 1]], axis=-1)          # (V, 4)
    voxel_num_points = jax.random.randint(k_num, (V,), 1, P + 1,
                                          dtype=jnp.int32)

    # pairwise_t_matrix / past_k_time_interval accepted for interface parity.
    pairwise_t_matrix = jnp.tile(jnp.eye(4, dtype=jnp.float32),
                                 (2, num_agents, 1, 1, 1))
    past_k_time_interval = jnp.zeros((num_agents, 1), jnp.float32)

    data_dict = {
        "voxel_features": voxel_features,
        "voxel_coords": voxel_coords,
        "voxel_num_points": voxel_num_points,
        "record_len": record_len,
        "pairwise_t_matrix": pairwise_t_matrix,
        "past_k_time_interval": past_k_time_interval,
    }

    out = forward(params, data_dict, voxel_size, pc_range, (H, W))
    jax.block_until_ready(out)

    assert out["psm"].shape == (2, 2, 8, 8)
    assert out["rm"].shape == (2, 14, 8, 8)
    assert out["psm_single"].shape == (num_agents, 2, 8, 8)
    assert out["rm_single"].shape == (num_agents, 14, 8, 8)
    assert jnp.isfinite(out["recon_loss"])
    print("KERNEL_OK")
</pallas_src>

<mosaic_0001>
module attributes {stable_mosaic.version = 11 : i64} {
  func.func @_pfn_kernel(%arg0: i32, %arg1: memref<64x8x16xbf16, #tpu.memory_space<vmem>>, %arg2: memref<16x64xbf16, #tpu.memory_space<vmem>>, %arg3: memref<1x64xf32, #tpu.memory_space<vmem>>, %arg4: memref<1x64xf32, #tpu.memory_space<vmem>>, %arg5: memref<64x64xbf16, #tpu.memory_space<vmem>>) attributes {dimension_semantics = [#tpu.dimension_semantics<parallel>], iteration_bounds = array<i64: 1>, scalar_prefetch = 0 : i64, scratch_operands = 0 : i64, tpu.core_type = #tpu.core_type<tc>, window_params = [{transform_indices = @transform_0, window_bounds = array<i64: 64, 8, 16>}, {pipeline_mode = #tpu.pipeline_mode<synchronous>, transform_indices = @transform_1, window_bounds = array<i64: 16, 64>}, {pipeline_mode = #tpu.pipeline_mode<synchronous>, transform_indices = @transform_2, window_bounds = array<i64: 1, 64>}, {pipeline_mode = #tpu.pipeline_mode<synchronous>, transform_indices = @transform_3, window_bounds = array<i64: 1, 64>}, {transform_indices = @transform_4, window_bounds = array<i64: 64, 64>}]} {
    %c0 = arith.constant 0 : index
    %c0_0 = arith.constant 0 : index
    %c0_1 = arith.constant 0 : index
    %0 = vector.load %arg1[%c0, %c0_0, %c0_1] : memref<64x8x16xbf16, #tpu.memory_space<vmem>>, vector<64x8x16xbf16>
    %1 = vector.shape_cast %0 : vector<64x8x16xbf16> to vector<512x16xbf16>
    %c0_2 = arith.constant 0 : index
    %c0_3 = arith.constant 0 : index
    %2 = vector.load %arg2[%c0_2, %c0_3] : memref<16x64xbf16, #tpu.memory_space<vmem>>, vector<16x64xbf16>
    %cst = arith.constant dense<0.000000e+00> : vector<512x64xf32>
    %3 = tpu.matmul %1, %2, %cst {dimension_numbers = #tpu.dot_dimension_numbers<[1], [0], [0], [1], [0, 0, 1, 1], [], []>} : vector<512x16xbf16>, vector<16x64xbf16>, vector<512x64xf32> -> vector<512x64xf32>
    %c0_4 = arith.constant 0 : index
    %c0_5 = arith.constant 0 : index
    %4 = vector.load %arg3[%c0_4, %c0_5] : memref<1x64xf32, #tpu.memory_space<vmem>>, vector<1x64xf32>
    %5 = vector.broadcast %4 : vector<1x64xf32> to vector<512x64xf32>
    %6 = arith.mulf %3, %5 : vector<512x64xf32>
    %c0_6 = arith.constant 0 : index
    %c0_7 = arith.constant 0 : index
    %7 = vector.load %arg4[%c0_6, %c0_7] : memref<1x64xf32, #tpu.memory_space<vmem>>, vector<1x64xf32>
    %8 = vector.broadcast %7 : vector<1x64xf32> to vector<512x64xf32>
    %9 = arith.addf %6, %8 : vector<512x64xf32>
    %cst_8 = arith.constant 0.000000e+00 : f32
    %10 = vector.broadcast %cst_8 : f32 to vector<512x64xf32>
    %11 = arith.maximumf %9, %10 : vector<512x64xf32>
    %12 = vector.shape_cast %11 : vector<512x64xf32> to vector<64x8x64xf32>
    %cst_9 = arith.constant dense<0xFF800000> : vector<64x64xf32>
    %13 = vector.multi_reduction <maximumf>, %12, %cst_9 [1] : vector<64x8x64xf32> to vector<64x64xf32>
    %14 = arith.truncf %13 : vector<64x64xf32> to vector<64x64xbf16>
    %c0_10 = arith.constant 0 : index
    %c0_11 = arith.constant 0 : index
    %15 = vector.load %arg5[%c0_10, %c0_11] : memref<64x64xbf16, #tpu.memory_space<vmem>>, vector<64x64xbf16>
    tpu.vector_store %arg5[%c0_10, %c0_11], %14 {strides = array<i32>} : memref<64x64xbf16, #tpu.memory_space<vmem>>, vector<64x64xbf16>,
    return
  }
  func.func @transform_0(%arg0: i32) -> (i32, i32, i32) {
    %c0_i32 = arith.constant 0 : i32
    %c0_i32_0 = arith.constant 0 : i32
    %c0_i32_1 = arith.constant 0 : i32
    return %arg0, %c0_i32, %c0_i32_0 : i32, i32, i32
  }
  func.func @transform_1(%arg0: i32) -> (i32, i32) {
    %c0_i32 = arith.constant 0 : i32
    %c0_i32_0 = arith.constant 0 : i32
    %c0_i32_1 = arith.constant 0 : i32
    return %c0_i32, %c0_i32_0 : i32, i32
  }
  func.func @transform_2(%arg0: i32) -> (i32, i32) {
    %c0_i32 = arith.constant 0 : i32
    %c0_i32_0 = arith.constant 0 : i32
    %c0_i32_1 = arith.constant 0 : i32
    return %c0_i32, %c0_i32_0 : i32, i32
  }
  func.func @transform_3(%arg0: i32) -> (i32, i32) {
    %c0_i32 = arith.constant 0 : i32
    %c0_i32_0 = arith.constant 0 : i32
    %c0_i32_1 = arith.constant 0 : i32
    return %c0_i32, %c0_i32_0 : i32, i32
  }
  func.func @transform_4(%arg0: i32) -> (i32, i32) {
    %c0_i32 = arith.constant 0 : i32
    %c0_i32_0 = arith.constant 0 : i32
    return %arg0, %c0_i32 : i32, i32
  }
}

</mosaic_0001>

<llo_original>
// kernel: tpu_custom_call.1
$region0: #{tpu_custom_call.1}
  #allocation0 [shape = 'u32[]', space=smem, size = 0x4, offset = 0x4, fixed_abs, tag = 'smem constant byte address 0x4 - core index']
  #allocation1 [shape = 'u32[144,128]{1,0:T(1,128)}', space=vmem, size = 0x12000, scoped, tag = 'internal scratch']
  %s0 = inlined_call_operand.vmem [shape: bf16[64,8,16], index: 0, kind: input, shape index: {}]
  %s1 = inlined_call_operand.vmem [shape: bf16[16,64], index: 1, kind: input, shape index: {}]
  %s2 = inlined_call_operand.vmem [shape: f32[1,64], index: 2, kind: input, shape index: {}]
  %s3 = inlined_call_operand.vmem [shape: f32[1,64], index: 3, kind: input, shape index: {}]
  %s4 = inlined_call_operand.hbm [shape: bf16[64,64], index: 4, kind: output, shape index: {}]
  %s5 = sld [smem:[#allocation0]]
  $region26: #{tpu_custom_call.1} parent=0
    _
  %s7 = ssub.s32 1, %s5
  %s8 = scalar_select 0, %s7, %s5
  $region1: #{tpu_custom_call.1} parent=0
    #allocation2 [shape = 'u8[16384]{0}', space=vmem, size = 0x4000, scoped, tag = 'output window, operand 0, single buffered']
    #allocation3 [shape = 's32[1]{0}', space=sflag, size = 0x4, scoped, tag = 'scoped memory for tpu_custom_call.1']
    %9 = vsyncpa [#allocation3], 0
    // Predicated region
    $region2: #{tpu_custom_call.1} parent=1 // pred_check
      _
    $region3: #{tpu_custom_call.1} parent=1 // pred_check_branch
      %11 = sbr.rel (0) target = $region5
    $region4: #{tpu_custom_call.1} parent=1 // pred_region
      _
    $region5: #{tpu_custom_call.1} parent=1 // pred_fallthru
      _
    // Predicated region
    $region6: #{tpu_custom_call.1} parent=1 // pred_check
      _
    $region7: #{tpu_custom_call.1} parent=1 // pred_check_branch
      %13 = sbr.rel (0) target = $region9
    $region8: #{tpu_custom_call.1} parent=1 // pred_region
      _
    $region9: #{tpu_custom_call.1} parent=1 // pred_fallthru
      _
    // Predicated region
    $region10: #{tpu_custom_call.1} parent=1 // pred_check
      _
    $region11: #{tpu_custom_call.1} parent=1 // pred_check_branch
      %15 = sbr.rel (0) target = $region13
    $region12: #{tpu_custom_call.1} parent=1 // pred_region
      _
    $region13: #{tpu_custom_call.1} parent=1 // pred_fallthru
      _
    // Predicated region
    $region14: #{tpu_custom_call.1} parent=1 // pred_check
      _
    $region15: #{tpu_custom_call.1} parent=1 // pred_check_branch
      %17 = sbr.rel (0) target = $region17
    $region16: #{tpu_custom_call.1} parent=1 // pred_region
      _
    $region17: #{tpu_custom_call.1} parent=1 // pred_fallthru
      _
    %v19 = vld [vmem:[%s0] sm:$0xf]
    %v20 = vld [vmem:[%s0 + $0x4] sm:$0xf]
    %v21 = vld [vmem:[%s0 + $0x8] sm:$0xf]
    %v22 = vld [vmem:[%s0 + $0xc] sm:$0xf]
    %v23 = vld [vmem:[%s0 + $0x10] sm:$0xf]
    %v24 = vld [vmem:[%s0 + $0x14] sm:$0xf]
    %v25 = vld [vmem:[%s0 + $0x18] sm:$0xf]
    %v26 = vld [vmem:[%s0 + $0x1c] sm:$0xf]
    %v27 = vld [vmem:[%s0 + $0x20] sm:$0xf]
    %v28 = vld [vmem:[%s0 + $0x24] sm:$0xf]
    %v29 = vld [vmem:[%s0 + $0x28] sm:$0xf]
    %v30 = vld [vmem:[%s0 + $0x2c] sm:$0xf]
    %v31 = vld [vmem:[%s0 + $0x30] sm:$0xf]
    %v32 = vld [vmem:[%s0 + $0x34] sm:$0xf]
    %v33 = vld [vmem:[%s0 + $0x38] sm:$0xf]
    %v34 = vld [vmem:[%s0 + $0x3c] sm:$0xf]
    %v35 = vld [vmem:[%s0 + $0x40] sm:$0xf]
    %v36 = vld [vmem:[%s0 + $0x44] sm:$0xf]
    %v37 = vld [vmem:[%s0 + $0x48] sm:$0xf]
    %v38 = vld [vmem:[%s0 + $0x4c] sm:$0xf]
    %v39 = vld [vmem:[%s0 + $0x50] sm:$0xf]
    %v40 = vld [vmem:[%s0 + $0x54] sm:$0xf]
    %v41 = vld [vmem:[%s0 + $0x58] sm:$0xf]
    %v42 = vld [vmem:[%s0 + $0x5c] sm:$0xf]
    %v43 = vld [vmem:[%s0 + $0x60] sm:$0xf]
    %v44 = vld [vmem:[%s0 + $0x64] sm:$0xf]
    %v45 = vld [vmem:[%s0 + $0x68] sm:$0xf]
    %v46 = vld [vmem:[%s0 + $0x6c] sm:$0xf]
    %v47 = vld [vmem:[%s0 + $0x70] sm:$0xf]
    %v48 = vld [vmem:[%s0 + $0x74] sm:$0xf]
    %v49 = vld [vmem:[%s0 + $0x78] sm:$0xf]
    %v50 = vld [vmem:[%s0 + $0x7c] sm:$0xf]
    %v51 = vld [vmem:[%s0 + $0x80] sm:$0xf]
    %v52 = vld [vmem:[%s0 + $0x84] sm:$0xf]
    %v53 = vld [vmem:[%s0 + $0x88] sm:$0xf]
    %v54 = vld [vmem:[%s0 + $0x8c] sm:$0xf]
    %v55 = vld [vmem:[%s0 + $0x90] sm:$0xf]
    %v56 = vld [vmem:[%s0 + $0x94] sm:$0xf]
    %v57 = vld [vmem:[%s0 + $0x98] sm:$0xf]
    %v58 = vld [vmem:[%s0 + $0x9c] sm:$0xf]
    %v59 = vld [vmem:[%s0 + $0xa0] sm:$0xf]
    %v60 = vld [vmem:[%s0 + $0xa4] sm:$0xf]
    %v61 = vld [vmem:[%s0 + $0xa8] sm:$0xf]
    %v62 = vld [vmem:[%s0 + $0xac] sm:$0xf]
    %v63 = vld [vmem:[%s0 + $0xb0] sm:$0xf]
    %v64 = vld [vmem:[%s0 + $0xb4] sm:$0xf]
    %v65 = vld [vmem:[%s0 + $0xb8] sm:$0xf]
    %v66 = vld [vmem:[%s0 + $0xbc] sm:$0xf]
    %v67 = vld [vmem:[%s0 + $0xc0] sm:$0xf]
    %v68 = vld [vmem:[%s0 + $0xc4] sm:$0xf]
    %v69 = vld [vmem:[%s0 + $0xc8] sm:$0xf]
    %v70 = vld [vmem:[%s0 + $0xcc] sm:$0xf]
    %v71 = vld [vmem:[%s0 + $0xd0] sm:$0xf]
    %v72 = vld [vmem:[%s0 + $0xd4] sm:$0xf]
    %v73 = vld [vmem:[%s0 + $0xd8] sm:$0xf]
    %v74 = vld [vmem:[%s0 + $0xdc] sm:$0xf]
    %v75 = vld [vmem:[%s0 + $0xe0] sm:$0xf]
    %v76 = vld [vmem:[%s0 + $0xe4] sm:$0xf]
    %v77 = vld [vmem:[%s0 + $0xe8] sm:$0xf]
    %v78 = vld [vmem:[%s0 + $0xec] sm:$0xf]
    %v79 = vld [vmem:[%s0 + $0xf0] sm:$0xf]
    %v80 = vld [vmem:[%s0 + $0xf4] sm:$0xf]
    %v81 = vld [vmem:[%s0 + $0xf8] sm:$0xf]
    %v82 = vld [vmem:[%s0 + $0xfc] sm:$0xf]
    %v83 = vld [vmem:[%s1] sm:$0xf]
    %v84 = vld [vmem:[%s1 + $0x4] sm:$0xf]
    %v149 = vunpack.c.l.b16 %v19
    %v150 = vunpack.c.l.b16 %v20
    %v151 = vunpack.c.l.b16 %v21
    %v152 = vunpack.c.l.b16 %v22
    %v153 = vunpack.c.l.b16 %v23
    %v154 = vunpack.c.l.b16 %v24
    %v155 = vunpack.c.l.b16 %v25
    %v156 = vunpack.c.l.b16 %v26
    %v157 = vunpack.c.l.b16 %v27
    %v158 = vunpack.c.l.b16 %v28
    %v159 = vunpack.c.l.b16 %v29
    %v160 = vunpack.c.l.b16 %v30
    %v161 = vunpack.c.l.b16 %v31
    %v162 = vunpack.c.l.b16 %v32
    %v163 = vunpack.c.l.b16 %v33
    %v164 = vunpack.c.l.b16 %v34
    %v165 = vunpack.c.l.b16 %v35
    %v166 = vunpack.c.l.b16 %v36
    %v167 = vunpack.c.l.b16 %v37
    %v168 = vunpack.c.l.b16 %v38
    %v169 = vunpack.c.l.b16 %v39
    %v170 = vunpack.c.l.b16 %v40
    %v171 = vunpack.c.l.b16 %v41
    %v172 = vunpack.c.l.b16 %v42
    %v173 = vunpack.c.l.b16 %v43
    %v174 = vunpack.c.l.b16 %v44
    %v175 = vunpack.c.l.b16 %v45
    %v176 = vunpack.c.l.b16 %v46
    %v177 = vunpack.c.l.b16 %v47
    %v178 = vunpack.c.l.b16 %v48
    %v179 = vunpack.c.l.b16 %v49
    %v180 = vunpack.c.l.b16 %v50
    %v181 = vunpack.c.l.b16 %v51
    %v182 = vunpack.c.l.b16 %v52
    %v183 = vunpack.c.l.b16 %v53
    %v184 = vunpack.c.l.b16 %v54
    %v185 = vunpack.c.l.b16 %v55
    %v186 = vunpack.c.l.b16 %v56
    %v187 = vunpack.c.l.b16 %v57
    %v188 = vunpack.c.l.b16 %v58
    %v189 = vunpack.c.l.b16 %v59
    %v190 = vunpack.c.l.b16 %v60
    %v191 = vunpack.c.l.b16 %v61
    %v192 = vunpack.c.l.b16 %v62
    %v193 = vunpack.c.l.b16 %v63
    %v194 = vunpack.c.l.b16 %v64
    %v195 = vunpack.c.l.b16 %v65
    %v196 = vunpack.c.l.b16 %v66
    %v197 = vunpack.c.l.b16 %v67
    %v198 = vunpack.c.l.b16 %v68
    %v199 = vunpack.c.l.b16 %v69
    %v200 = vunpack.c.l.b16 %v70
    %v201 = vunpack.c.l.b16 %v71
    %v202 = vunpack.c.l.b16 %v72
    %v203 = vunpack.c.l.b16 %v73
    %v204 = vunpack.c.l.b16 %v74
    %v205 = vunpack.c.l.b16 %v75
    %v206 = vunpack.c.l.b16 %v76
    %v207 = vunpack.c.l.b16 %v77
    %v208 = vunpack.c.l.b16 %v78
    %v209 = vunpack.c.l.b16 %v79
    %v210 = vunpack.c.l.b16 %v80
    %v211 = vunpack.c.l.b16 %v81
    %v212 = vunpack.c.l.b16 %v82
    %v213 = vpack.c.b16 %v150, %v149
    %v214 = vpack.c.b16 %v152, %v151
    %v215 = vpack.c.b16 %v154, %v153
    %v216 = vpack.c.b16 %v156, %v155
    %v217 = vpack.c.b16 %v158, %v157
    %v218 = vpack.c.b16 %v160, %v159
    %v219 = vpack.c.b16 %v162, %v161
    %v220 = vpack.c.b16 %v164, %v163
    %v221 = vpack.c.b16 %v166, %v165
    %v222 = vpack.c.b16 %v168, %v167
    %v223 = vpack.c.b16 %v170, %v169
    %v224 = vpack.c.b16 %v172, %v171
    %v225 = vpack.c.b16 %v174, %v173
    %v226 = vpack.c.b16 %v176, %v175
    %v227 = vpack.c.b16 %v178, %v177
    %v228 = vpack.c.b16 %v180, %v179
    %v229 = vpack.c.b16 %v182, %v181
    %v230 = vpack.c.b16 %v184, %v183
    %v231 = vpack.c.b16 %v186, %v185
    %v232 = vpack.c.b16 %v188, %v187
    %v233 = vpack.c.b16 %v190, %v189
    %v234 = vpack.c.b16 %v192, %v191
    %v235 = vpack.c.b16 %v194, %v193
    %v236 = vpack.c.b16 %v196, %v195
    %v237 = vpack.c.b16 %v198, %v197
    %v238 = vpack.c.b16 %v200, %v199
    %v239 = vpack.c.b16 %v202, %v201
    %v240 = vpack.c.b16 %v204, %v203
    %v241 = vpack.c.b16 %v206, %v205
    %v242 = vpack.c.b16 %v208, %v207
    %v243 = vpack.c.b16 %v210, %v209
    %v244 = vpack.c.b16 %v212, %v211
    %v247 = vunpack.c.l.b16 %v83
    %v248 = vunpack.c.l.b16 %v84
    %v249 = vpack.c.b16 %v248, %v247
    %vm251 = vcmask 130048
    %v253 = vsel %vm251, %v213, 0
    %v256 = vsel %vm251, %v214, 0
    %v259 = vsel %vm251, %v215, 0
    %v262 = vsel %vm251, %v216, 0
    %v265 = vsel %vm251, %v217, 0
    %v268 = vsel %vm251, %v218, 0
    %v271 = vsel %vm251, %v219, 0
    %v274 = vsel %vm251, %v220, 0
    %v277 = vsel %vm251, %v221, 0
    %v280 = vsel %vm251, %v222, 0
    %v283 = vsel %vm251, %v223, 0
    %v286 = vsel %vm251, %v224, 0
    %v289 = vsel %vm251, %v225, 0
    %v292 = vsel %vm251, %v226, 0
    %v295 = vsel %vm251, %v227, 0
    %v298 = vsel %vm251, %v228, 0
    %v301 = vsel %vm251, %v229, 0
    %v304 = vsel %vm251, %v230, 0
    %v307 = vsel %vm251, %v231, 0
    %v310 = vsel %vm251, %v232, 0
    %v313 = vsel %vm251, %v233, 0
    %v316 = vsel %vm251, %v234, 0
    %v319 = vsel %vm251, %v235, 0
    %v322 = vsel %vm251, %v236, 0
    %v325 = vsel %vm251, %v237, 0
    %v328 = vsel %vm251, %v238, 0
    %v331 = vsel %vm251, %v239, 0
    %v334 = vsel %vm251, %v240, 0
    %v337 = vsel %vm251, %v241, 0
    %v340 = vsel %vm251, %v242, 0
    %v343 = vsel %vm251, %v243, 0
    %v346 = vsel %vm251, %v244, 0
    %348 = vmatprep.subr.bf16.mxu0 0
    %349 = vmatpush1.bf16.msra.mxu0 0
    %350 = vmatprep.subr.bf16.mxu0 0
    %351 = vmatpush1.bf16.msra.mxu0 0
    %352 = vmatprep.subr.bf16.mxu0 0
    %353 = vmatpush1.bf16.msra.mxu0 0
    %354 = vmatprep.subr.bf16.mxu0 0
    %355 = vmatpush1.bf16.msra.mxu0 0
    %356 = vmatprep.subr.bf16.mxu0 0
    %357 = vmatpush1.bf16.msra.mxu0 0
    %358 = vmatprep.subr.bf16.mxu0 0
    %359 = vmatpush1.bf16.msra.mxu0 0
    %360 = vmatprep.subr.bf16.mxu0 0
    %361 = vmatpush1.bf16.msra.mxu0 0
    %362 = vmatprep.subr.bf16.mxu0 0
    %363 = vmatpush1.bf16.msra.mxu0 %v249
    %364 = vmatprep.subr.bf16.mxu0 0
    %365 = vmatpush2.bf16.msra.mxu0 0
    %366 = vmatprep.subr.bf16.mxu0 0
    %367 = vmatpush2.bf16.msra.mxu0 0
    %368 = vmatprep.subr.bf16.mxu0 0
    %369 = vmatpush2.bf16.msra.mxu0 0
    %370 = vmatprep.subr.bf16.mxu0 0
    %371 = vmatpush2.bf16.msra.mxu0 0
    %372 = vmatprep.subr.bf16.mxu0 0
    %373 = vmatpush2.bf16.msra.mxu0 0
    %374 = vmatprep.subr.bf16.mxu0 0
    %375 = vmatpush2.bf16.msra.mxu0 0
    %376 = vmatprep.subr.bf16.mxu0 0
    %377 = vmatpush2.bf16.msra.mxu0 0
    %378 = vmatprep.subr.bf16.mxu0 0
    %379 = vmatpush2.bf16.msra.mxu0 0
    %380 = vmatprep.mubr.bf16.mxu0 0
    %381 = vmatmul.mubr.bf16.gmra.mxu0 %v253
    %v382 = vpop.f32.mrf.mxu0
    %v383 = vadd.f32 0.0, %v382
    %v384 = vpop.f32.mrf.mxu0
    %v385 = vpop.f32.mrf.mxu0
    %v386 = vadd.f32 0.0, %v385
    %v387 = vpop.f32.mrf.mxu0
    %388 = vmatprep.mubr.bf16.mxu0 0
    %389 = vmatmul.mubr.bf16.gmra.mxu0 %v256
    %v390 = vpop.f32.mrf.mxu0
    %v391 = vadd.f32 0.0, %v390
    %v392 = vpop.f32.mrf.mxu0
    %v393 = vpop.f32.mrf.mxu0
    %v394 = vadd.f32 0.0, %v393
    %v395 = vpop.f32.mrf.mxu0
    %396 = vmatprep.mubr.bf16.mxu0 0
    %397 = vmatmul.mubr.bf16.gmra.mxu0 %v259
    %v398 = vpop.f32.mrf.mxu0
    %v399 = vadd.f32 0.0, %v398
    %v400 = vpop.f32.mrf.mxu0
    %v401 = vpop.f32.mrf.mxu0
    %v402 = vadd.f32 0.0, %v401
    %v403 = vpop.f32.mrf.mxu0
    %404 = vmatprep.mubr.bf16.mxu0 0
    %405 = vmatmul.mubr.bf16.gmra.mxu0 %v262
    %v406 = vpop.f32.mrf.mxu0
    %v407 = vadd.f32 0.0, %v406
    %v408 = vpop.f32.mrf.mxu0
    %v409 = vpop.f32.mrf.mxu0
    %v410 = vadd.f32 0.0, %v409
    %v411 = vpop.f32.mrf.mxu0
    %412 = vmatprep.mubr.bf16.mxu0 0
    %413 = vmatmul.mubr.bf16.gmra.mxu0 %v265
    %v414 = vpop.f32.mrf.mxu0
    %v415 = vadd.f32 0.0, %v414
    %v416 = vpop.f32.mrf.mxu0
    %v417 = vpop.f32.mrf.mxu0
    %v418 = vadd.f32 0.0, %v417
    %v419 = vpop.f32.mrf.mxu0
    %420 = vmatprep.mubr.bf16.mxu0 0
    %421 = vmatmul.mubr.bf16.gmra.mxu0 %v268
    %v422 = vpop.f32.mrf.mxu0
    %v423 = vadd.f32 0.0, %v422
    %v424 = vpop.f32.mrf.mxu0
    %v425 = vpop.f32.mrf.mxu0
    %v426 = vadd.f32 0.0, %v425
    %v427 = vpop.f32.mrf.mxu0
    %428 = vmatprep.mubr.bf16.mxu0 0
    %429 = vmatmul.mubr.bf16.gmra.mxu0 %v271
    %v430 = vpop.f32.mrf.mxu0
    %v431 = vadd.f32 0.0, %v430
    %v432 = vpop.f32.mrf.mxu0
    %v433 = vpop.f32.mrf.mxu0
    %v434 = vadd.f32 0.0, %v433
    %v435 = vpop.f32.mrf.mxu0
    %436 = vmatprep.mubr.bf16.mxu0 0
    %437 = vmatmul.mubr.bf16.gmra.mxu0 %v274
    %v438 = vpop.f32.mrf.mxu0
    %v439 = vadd.f32 0.0, %v438
    %v440 = vpop.f32.mrf.mxu0
    %v441 = vpop.f32.mrf.mxu0
    %v442 = vadd.f32 0.0, %v441
    %v443 = vpop.f32.mrf.mxu0
    %444 = vmatprep.mubr.bf16.mxu0 0
    %445 = vmatmul.mubr.bf16.gmra.mxu0 %v277
    %v446 = vpop.f32.mrf.mxu0
    %v447 = vadd.f32 0.0, %v446
    %v448 = vpop.f32.mrf.mxu0
    %v449 = vpop.f32.mrf.mxu0
    %v450 = vadd.f32 0.0, %v449
    %v451 = vpop.f32.mrf.mxu0
    %452 = vmatprep.mubr.bf16.mxu0 0
    %453 = vmatmul.mubr.bf16.gmra.mxu0 %v280
    %v454 = vpop.f32.mrf.mxu0
    %v455 = vadd.f32 0.0, %v454
    %v456 = vpop.f32.mrf.mxu0
    %v457 = vpop.f32.mrf.mxu0
    %v458 = vadd.f32 0.0, %v457
    %v459 = vpop.f32.mrf.mxu0
    %460 = vmatprep.mubr.bf16.mxu0 0
    %461 = vmatmul.mubr.bf16.gmra.mxu0 %v283
    %v462 = vpop.f32.mrf.mxu0
    %v463 = vadd.f32 0.0, %v462
    %v464 = vpop.f32.mrf.mxu0
    %v465 = vpop.f32.mrf.mxu0
    %v466 = vadd.f32 0.0, %v465
    %v467 = vpop.f32.mrf.mxu0
    %468 = vmatprep.mubr.bf16.mxu0 0
    %469 = vmatmul.mubr.bf16.gmra.mxu0 %v286
    %v470 = vpop.f32.mrf.mxu0
    %v471 = vadd.f32 0.0, %v470
    %v472 = vpop.f32.mrf.mxu0
    %v473 = vpop.f32.mrf.mxu0
    %v474 = vadd.f32 0.0, %v473
    %v475 = vpop.f32.mrf.mxu0
    %476 = vmatprep.mubr.bf16.mxu0 0
    %477 = vmatmul.mubr.bf16.gmra.mxu0 %v289
    %v478 = vpop.f32.mrf.mxu0
    %v479 = vadd.f32 0.0, %v478
    %v480 = vpop.f32.mrf.mxu0
    %v481 = vpop.f32.mrf.mxu0
    %v482 = vadd.f32 0.0, %v481
    %v483 = vpop.f32.mrf.mxu0
    %484 = vmatprep.mubr.bf16.mxu0 0
    %485 = vmatmul.mubr.bf16.gmra.mxu0 %v292
    %v486 = vpop.f32.mrf.mxu0
    %v487 = vadd.f32 0.0, %v486
    %v488 = vpop.f32.mrf.mxu0
    %v489 = vpop.f32.mrf.mxu0
    %v490 = vadd.f32 0.0, %v489
    %v491 = vpop.f32.mrf.mxu0
    %492 = vmatprep.mubr.bf16.mxu0 0
    %493 = vmatmul.mubr.bf16.gmra.mxu0 %v295
    %v494 = vpop.f32.mrf.mxu0
    %v495 = vadd.f32 0.0, %v494
    %v496 = vpop.f32.mrf.mxu0
    %v497 = vpop.f32.mrf.mxu0
    %v498 = vadd.f32 0.0, %v497
    %v499 = vpop.f32.mrf.mxu0
    %500 = vmatprep.mubr.bf16.mxu0 0
    %501 = vmatmul.mubr.bf16.gmra.mxu0 %v298
    %v502 = vpop.f32.mrf.mxu0
    %v503 = vadd.f32 0.0, %v502
    %v504 = vpop.f32.mrf.mxu0
    %v505 = vpop.f32.mrf.mxu0
    %v506 = vadd.f32 0.0, %v505
    %v507 = vpop.f32.mrf.mxu0
    %508 = vmatprep.mubr.bf16.mxu0 0
    %509 = vmatmul.mubr.bf16.gmra.mxu0 %v301
    %v510 = vpop.f32.mrf.mxu0
    %v511 = vadd.f32 0.0, %v510
    %v512 = vpop.f32.mrf.mxu0
    %v513 = vpop.f32.mrf.mxu0
    %v514 = vadd.f32 0.0, %v513
    %v515 = vpop.f32.mrf.mxu0
    %516 = vmatprep.mubr.bf16.mxu0 0
    %517 = vmatmul.mubr.bf16.gmra.mxu0 %v304
    %v518 = vpop.f32.mrf.mxu0
    %v519 = vadd.f32 0.0, %v518
    %v520 = vpop.f32.mrf.mxu0
    %v521 = vpop.f32.mrf.mxu0
    %v522 = vadd.f32 0.0, %v521
    %v523 = vpop.f32.mrf.mxu0
    %524 = vmatprep.mubr.bf16.mxu0 0
    %525 = vmatmul.mubr.bf16.gmra.mxu0 %v307
    %v526 = vpop.f32.mrf.mxu0
    %v527 = vadd.f32 0.0, %v526
    %v528 = vpop.f32.mrf.mxu0
    %v529 = vpop.f32.mrf.mxu0
    %v530 = vadd.f32 0.0, %v529
    %v531 = vpop.f32.mrf.mxu0
    %532 = vmatprep.mubr.bf16.mxu0 0
    %533 = vmatmul.mubr.bf16.gmra.mxu0 %v310
    %v534 = vpop.f32.mrf.mxu0
    %v535 = vadd.f32 0.0, %v534
    %v536 = vpop.f32.mrf.mxu0
    %v537 = vpop.f32.mrf.mxu0
    %v538 = vadd.f32 0.0, %v537
    %v539 = vpop.f32.mrf.mxu0
    %540 = vmatprep.mubr.bf16.mxu0 0
    %541 = vmatmul.mubr.bf16.gmra.mxu0 %v313
    %v542 = vpop.f32.mrf.mxu0
    %v543 = vadd.f32 0.0, %v542
    %v544 = vpop.f32.mrf.mxu0
    %v545 = vpop.f32.mrf.mxu0
    %v546 = vadd.f32 0.0, %v545
    %v547 = vpop.f32.mrf.mxu0
    %548 = vmatprep.mubr.bf16.mxu0 0
    %549 = vmatmul.mubr.bf16.gmra.mxu0 %v316
    %v550 = vpop.f32.mrf.mxu0
    %v551 = vadd.f32 0.0, %v550
    %v552 = vpop.f32.mrf.mxu0
    %v553 = vpop.f32.mrf.mxu0
    %v554 = vadd.f32 0.0, %v553
    %v555 = vpop.f32.mrf.mxu0
    %556 = vmatprep.mubr.bf16.mxu0 0
    %557 = vmatmul.mubr.bf16.gmra.mxu0 %v319
    %v558 = vpop.f32.mrf.mxu0
    %v559 = vadd.f32 0.0, %v558
    %v560 = vpop.f32.mrf.mxu0
    %v561 = vpop.f32.mrf.mxu0
    %v562 = vadd.f32 0.0, %v561
    %v563 = vpop.f32.mrf.mxu0
    %564 = vmatprep.mubr.bf16.mxu0 0
    %565 = vmatmul.mubr.bf16.gmra.mxu0 %v322
    %v566 = vpop.f32.mrf.mxu0
    %v567 = vadd.f32 0.0, %v566
    %v568 = vpop.f32.mrf.mxu0
    %v569 = vpop.f32.mrf.mxu0
    %v570 = vadd.f32 0.0, %v569
    %v571 = vpop.f32.mrf.mxu0
    %572 = vmatprep.mubr.bf16.mxu0 0
    %573 = vmatmul.mubr.bf16.gmra.mxu0 %v325
    %v574 = vpop.f32.mrf.mxu0
    %v575 = vadd.f32 0.0, %v574
    %v576 = vpop.f32.mrf.mxu0
    %v577 = vpop.f32.mrf.mxu0
    %v578 = vadd.f32 0.0, %v577
    %v579 = vpop.f32.mrf.mxu0
    %580 = vmatprep.mubr.bf16.mxu0 0
    %581 = vmatmul.mubr.bf16.gmra.mxu0 %v328
    %v582 = vpop.f32.mrf.mxu0
    %v583 = vadd.f32 0.0, %v582
    %v584 = vpop.f32.mrf.mxu0
    %v585 = vpop.f32.mrf.mxu0
    %v586 = vadd.f32 0.0, %v585
    %v587 = vpop.f32.mrf.mxu0
    %588 = vmatprep.mubr.bf16.mxu0 0
    %589 = vmatmul.mubr.bf16.gmra.mxu0 %v331
    %v590 = vpop.f32.mrf.mxu0
    %v591 = vadd.f32 0.0, %v590
    %v592 = vpop.f32.mrf.mxu0
    %v593 = vpop.f32.mrf.mxu0
    %v594 = vadd.f32 0.0, %v593
    %v595 = vpop.f32.mrf.mxu0
    %596 = vmatprep.mubr.bf16.mxu0 0
    %597 = vmatmul.mubr.bf16.gmra.mxu0 %v334
    %v598 = vpop.f32.mrf.mxu0
    %v599 = vadd.f32 0.0, %v598
    %v600 = vpop.f32.mrf.mxu0
    %v601 = vpop.f32.mrf.mxu0
    %v602 = vadd.f32 0.0, %v601
    %v603 = vpop.f32.mrf.mxu0
    %604 = vmatprep.mubr.bf16.mxu0 0
    %605 = vmatmul.mubr.bf16.gmra.mxu0 %v337
    %v606 = vpop.f32.mrf.mxu0
    %v607 = vadd.f32 0.0, %v606
    %v608 = vpop.f32.mrf.mxu0
    %v609 = vpop.f32.mrf.mxu0
    %v610 = vadd.f32 0.0, %v609
    %v611 = vpop.f32.mrf.mxu0
    %612 = vmatprep.mubr.bf16.mxu0 0
    %613 = vmatmul.mubr.bf16.gmra.mxu0 %v340
    %v614 = vpop.f32.mrf.mxu0
    %v615 = vadd.f32 0.0, %v614
    %v616 = vpop.f32.mrf.mxu0
    %v617 = vpop.f32.mrf.mxu0
    %v618 = vadd.f32 0.0, %v617
    %v619 = vpop.f32.mrf.mxu0
    %620 = vmatprep.mubr.bf16.mxu0 0
    %621 = vmatmul.mubr.bf16.gmra.mxu0 %v343
    %v622 = vpop.f32.mrf.mxu0
    %v623 = vadd.f32 0.0, %v622
    %v624 = vpop.f32.mrf.mxu0
    %v625 = vpop.f32.mrf.mxu0
    %v626 = vadd.f32 0.0, %v625
    %v627 = vpop.f32.mrf.mxu0
    %628 = vmatprep.mubr.bf16.mxu0 0
    %629 = vmatmul.mubr.bf16.gmra.mxu0 %v346
    %v630 = vpop.f32.mrf.mxu0
    %v631 = vadd.f32 0.0, %v630
    %v632 = vpop.f32.mrf.mxu0
    %v633 = vpop.f32.mrf.mxu0
    %v634 = vadd.f32 0.0, %v633
    %v635 = vpop.f32.mrf.mxu0
    %636 = vdwg.mxu0
    %v637 = vld [vmem:[%s2] sm:$0x1]
    %v639 = vlaneseq
    %v640 = vshrl.u32 %v639, 7
    %v641 = vsub.s32 0, %v640
    %v642 = vrot.slane %v637, %v641
    %v644 = vmul.f32 %v383, %v642
    %v645 = vmul.f32 %v386, %v642
    %v646 = vmul.f32 %v391, %v642
    %v647 = vmul.f32 %v394, %v642
    %v648 = vmul.f32 %v399, %v642
    %v649 = vmul.f32 %v402, %v642
    %v650 = vmul.f32 %v407, %v642
    %v651 = vmul.f32 %v410, %v642
    %v652 = vmul.f32 %v415, %v642
    %v653 = vmul.f32 %v418, %v642
    %v654 = vmul.f32 %v423, %v642
    %v655 = vmul.f32 %v426, %v642
    %v656 = vmul.f32 %v431, %v642
    %v657 = vmul.f32 %v434, %v642
    %v658 = vmul.f32 %v439, %v642
    %v659 = vmul.f32 %v442, %v642
    %v660 = vmul.f32 %v447, %v642
    %v661 = vmul.f32 %v450, %v642
    %v662 = vmul.f32 %v455, %v642
    %v663 = vmul.f32 %v458, %v642
    %v664 = vmul.f32 %v463, %v642
    %v665 = vmul.f32 %v466, %v642
    %v666 = vmul.f32 %v471, %v642
    %v667 = vmul.f32 %v474, %v642
    %v668 = vmul.f32 %v479, %v642
    %v669 = vmul.f32 %v482, %v642
    %v670 = vmul.f32 %v487, %v642
    %v671 = vmul.f32 %v490, %v642
    %v672 = vmul.f32 %v495, %v642
    %v673 = vmul.f32 %v498, %v642
    %v674 = vmul.f32 %v503, %v642
    %v675 = vmul.f32 %v506, %v642
    %v676 = vmul.f32 %v511, %v642
    %v677 = vmul.f32 %v514, %v642
    %v678 = vmul.f32 %v519, %v642
    %v679 = vmul.f32 %v522, %v642
    %v680 = vmul.f32 %v527, %v642
    %v681 = vmul.f32 %v530, %v642
    %v682 = vmul.f32 %v535, %v642
    %v683 = vmul.f32 %v538, %v642
    %v684 = vmul.f32 %v543, %v642
    %v685 = vmul.f32 %v546, %v642
    %v686 = vmul.f32 %v551, %v642
    %v687 = vmul.f32 %v554, %v642
    %v688 = vmul.f32 %v559, %v642
    %v689 = vmul.f32 %v562, %v642
    %v690 = vmul.f32 %v567, %v642
    %v691 = vmul.f32 %v570, %v642
    %v692 = vmul.f32 %v575, %v642
    %v693 = vmul.f32 %v578, %v642
    %v694 = vmul.f32 %v583, %v642
    %v695 = vmul.f32 %v586, %v642
    %v696 = vmul.f32 %v591, %v642
    %v697 = vmul.f32 %v594, %v642
    %v698 = vmul.f32 %v599, %v642
    %v699 = vmul.f32 %v602, %v642
    %v700 = vmul.f32 %v607, %v642
    %v701 = vmul.f32 %v610, %v642
    %v702 = vmul.f32 %v615, %v642
    %v703 = vmul.f32 %v618, %v642
    %v704 = vmul.f32 %v623, %v642
    %v705 = vmul.f32 %v626, %v642
    %v706 = vmul.f32 %v631, %v642
    %v707 = vmul.f32 %v634, %v642
    %v708 = vld [vmem:[%s3] sm:$0x1]
    %v710 = vlaneseq
    %v711 = vshrl.u32 %v710, 7
    %v712 = vsub.s32 0, %v711
    %v713 = vrot.slane %v708, %v712
    %v715 = vadd.f32 %v644, %v713
    %v716 = vadd.f32 %v645, %v713
    %v717 = vadd.f32 %v646, %v713
    %v718 = vadd.f32 %v647, %v713
    %v719 = vadd.f32 %v648, %v713
    %v720 = vadd.f32 %v649, %v713
    %v721 = vadd.f32 %v650, %v713
    %v722 = vadd.f32 %v651, %v713
    %v723 = vadd.f32 %v652, %v713
    %v724 = vadd.f32 %v653, %v713
    %v725 = vadd.f32 %v654, %v713
    %v726 = vadd.f32 %v655, %v713
    %v727 = vadd.f32 %v656, %v713
    %v728 = vadd.f32 %v657, %v713
    %v729 = vadd.f32 %v658, %v713
    %v730 = vadd.f32 %v659, %v713
    %v731 = vadd.f32 %v660, %v713
    %v732 = vadd.f32 %v661, %v713
    %v733 = vadd.f32 %v662, %v713
    %v734 = vadd.f32 %v663, %v713
    %v735 = vadd.f32 %v664, %v713
    %v736 = vadd.f32 %v665, %v713
    %v737 = vadd.f32 %v666, %v713
    %v738 = vadd.f32 %v667, %v713
    %v739 = vadd.f32 %v668, %v713
    %v740 = vadd.f32 %v669, %v713
    %v741 = vadd.f32 %v670, %v713
    %v742 = vadd.f32 %v671, %v713
    %v743 = vadd.f32 %v672, %v713
    %v744 = vadd.f32 %v673, %v713
    %v745 = vadd.f32 %v674, %v713
    %v746 = vadd.f32 %v675, %v713
    %v747 = vadd.f32 %v676, %v713
    %v748 = vadd.f32 %v677, %v713
    %v749 = vadd.f32 %v678, %v713
    %v750 = vadd.f32 %v679, %v713
    %v751 = vadd.f32 %v680, %v713
    %v752 = vadd.f32 %v681, %v713
    %v753 = vadd.f32 %v682, %v713
    %v754 = vadd.f32 %v683, %v713
    %v755 = vadd.f32 %v684, %v713
    %v756 = vadd.f32 %v685, %v713
    %v757 = vadd.f32 %v686, %v713
    %v758 = vadd.f32 %v687, %v713
    %v759 = vadd.f32 %v688, %v713
    %v760 = vadd.f32 %v689, %v713
    %v761 = vadd.f32 %v690, %v713
    %v762 = vadd.f32 %v691, %v713
    %v763 = vadd.f32 %v692, %v713
    %v764 = vadd.f32 %v693, %v713
    %v765 = vadd.f32 %v694, %v713
    %v766 = vadd.f32 %v695, %v713
    %v767 = vadd.f32 %v696, %v713
    %v768 = vadd.f32 %v697, %v713
    %v769 = vadd.f32 %v698, %v713
    %v770 = vadd.f32 %v699, %v713
    %v771 = vadd.f32 %v700, %v713
    %v772 = vadd.f32 %v701, %v713
    %v773 = vadd.f32 %v702, %v713
    %v774 = vadd.f32 %v703, %v713
    %v775 = vadd.f32 %v704, %v713
    %v776 = vadd.f32 %v705, %v713
    %v777 = vadd.f32 %v706, %v713
    %v778 = vadd.f32 %v707, %v713
    %v779 = vmax.f32 %v715, 0.0
    %v780 = vmax.f32 %v716, 0.0
    %v781 = vmax.f32 %v717, 0.0
    %v782 = vmax.f32 %v718, 0.0
    %v783 = vmax.f32 %v719, 0.0
    %v784 = vmax.f32 %v720, 0.0
    %v785 = vmax.f32 %v721, 0.0
    %v786 = vmax.f32 %v722, 0.0
    %v787 = vmax.f32 %v723, 0.0
    %v788 = vmax.f32 %v724, 0.0
    %v789 = vmax.f32 %v725, 0.0
    %v790 = vmax.f32 %v726, 0.0
    %v791 = vmax.f32 %v727, 0.0
    %v792 = vmax.f32 %v728, 0.0
    %v793 = vmax.f32 %v729, 0.0
    %v794 = vmax.f32 %v730, 0.0
    %v795 = vmax.f32 %v731, 0.0
    %v796 = vmax.f32 %v732, 0.0
    %v797 = vmax.f32 %v733, 0.0
    %v798 = vmax.f32 %v734, 0.0
    %v799 = vmax.f32 %v735, 0.0
    %v800 = vmax.f32 %v736, 0.0
    %v801 = vmax.f32 %v737, 0.0
    %v802 = vmax.f32 %v738, 0.0
    %v803 = vmax.f32 %v739, 0.0
    %v804 = vmax.f32 %v740, 0.0
    %v805 = vmax.f32 %v741, 0.0
    %v806 = vmax.f32 %v742, 0.0
    %v807 = vmax.f32 %v743, 0.0
    %v808 = vmax.f32 %v744, 0.0
    %v809 = vmax.f32 %v745, 0.0
    %v810 = vmax.f32 %v746, 0.0
    %v811 = vmax.f32 %v747, 0.0
    %v812 = vmax.f32 %v748, 0.0
    %v813 = vmax.f32 %v749, 0.0
    %v814 = vmax.f32 %v750, 0.0
    %v815 = vmax.f32 %v751, 0.0
    %v816 = vmax.f32 %v752, 0.0
    %v817 = vmax.f32 %v753, 0.0
    %v818 = vmax.f32 %v754, 0.0
    %v819 = vmax.f32 %v755, 0.0
    %v820 = vmax.f32 %v756, 0.0
    %v821 = vmax.f32 %v757, 0.0
    %v822 = vmax.f32 %v758, 0.0
    %v823 = vmax.f32 %v759, 0.0
    %v824 = vmax.f32 %v760, 0.0
    %v825 = vmax.f32 %v761, 0.0
    %v826 = vmax.f32 %v762, 0.0
    %v827 = vmax.f32 %v763, 0.0
    %v828 = vmax.f32 %v764, 0.0
    %v829 = vmax.f32 %v765, 0.0
    %v830 = vmax.f32 %v766, 0.0
    %v831 = vmax.f32 %v767, 0.0
    %v832 = vmax.f32 %v768, 0.0
    %v833 = vmax.f32 %v769, 0.0
    %v834 = vmax.f32 %v770, 0.0
    %v835 = vmax.f32 %v771, 0.0
    %v836 = vmax.f32 %v772, 0.0
    %v837 = vmax.f32 %v773, 0.0
    %v838 = vmax.f32 %v774, 0.0
    %v839 = vmax.f32 %v775, 0.0
    %v840 = vmax.f32 %v776, 0.0
    %v841 = vmax.f32 %v777, 0.0
    %v842 = vmax.f32 %v778, 0.0
    %vm843 = vcmask 523264
    %v844 = vsel %vm843, %v779, -inf
    %v845 = vrot.slane %v844, 4
    %v846 = vmax.f32 %v844, %v845
    %v847 = vrot.slane %v846, 2
    %v848 = vmax.f32 %v846, %v847
    %v849 = vrot.slane %v848, 1
    %v850 = vmax.f32 %v848, %v849
    %v851 = vsel %vm843, %v780, -inf
    %v852 = vrot.slane %v851, 4
    %v853 = vmax.f32 %v851, %v852
    %v854 = vrot.slane %v853, 2
    %v855 = vmax.f32 %v853, %v854
    %v856 = vrot.slane %v855, 1
    %v857 = vmax.f32 %v855, %v856
    %v858 = vsel %vm843, %v781, -inf
    %v859 = vrot.slane %v858, 4
    %v860 = vmax.f32 %v858, %v859
    %v861 = vrot.slane %v860, 2
    %v862 = vmax.f32 %v860, %v861
    %v863 = vrot.slane %v862, 1
    %v864 = vmax.f32 %v862, %v863
    %v865 = vsel %vm843, %v782, -inf
    %v866 = vrot.slane %v865, 4
    %v867 = vmax.f32 %v865, %v866
    %v868 = vrot.slane %v867, 2
    %v869 = vmax.f32 %v867, %v868
    %v870 = vrot.slane %v869, 1
    %v871 = vmax.f32 %v869, %v870
    %v872 = vsel %vm843, %v783, -inf
    %v873 = vrot.slane %v872, 4
    %v874 = vmax.f32 %v872, %v873
    %v875 = vrot.slane %v874, 2
    %v876 = vmax.f32 %v874, %v875
    %v877 = vrot.slane %v876, 1
    %v878 = vmax.f32 %v876, %v877
    %v879 = vsel %vm843, %v784, -inf
    %v880 = vrot.slane %v879, 4
    %v881 = vmax.f32 %v879, %v880
    %v882 = vrot.slane %v881, 2
    %v883 = vmax.f32 %v881, %v882
    %v884 = vrot.slane %v883, 1
    %v885 = vmax.f32 %v883, %v884
    %v886 = vsel %vm843, %v785, -inf
    %v887 = vrot.slane %v886, 4
    %v888 = vmax.f32 %v886, %v887
    %v889 = vrot.slane %v888, 2
    %v890 = vmax.f32 %v888, %v889
    %v891 = vrot.slane %v890, 1
    %v892 = vmax.f32 %v890, %v891
    %v893 = vsel %vm843, %v786, -inf
    %v894 = vrot.slane %v893, 4
    %v895 = vmax.f32 %v893, %v894
    %v896 = vrot.slane %v895, 2
    %v897 = vmax.f32 %v895, %v896
    %v898 = vrot.slane %v897, 1
    %v899 = vmax.f32 %v897, %v898
    %v900 = vsel %vm843, %v787, -inf
    %v901 = vrot.slane %v900, 4
    %v902 = vmax.f32 %v900, %v901
    %v903 = vrot.slane %v902, 2
    %v904 = vmax.f32 %v902, %v903
    %v905 = vrot.slane %v904, 1
    %v906 = vmax.f32 %v904, %v905
    %v907 = vsel %vm843, %v788, -inf
    %v908 = vrot.slane %v907, 4
    %v909 = vmax.f32 %v907, %v908
    %v910 = vrot.slane %v909, 2
    %v911 = vmax.f32 %v909, %v910
    %v912 = vrot.slane %v911, 1
    %v913 = vmax.f32 %v911, %v912
    %v914 = vsel %vm843, %v789, -inf
    %v915 = vrot.slane %v914, 4
    %v916 = vmax.f32 %v914, %v915
    %v917 = vrot.slane %v916, 2
    %v918 = vmax.f32 %v916, %v917
    %v919 = vrot.slane %v918, 1
    %v920 = vmax.f32 %v918, %v919
    %v921 = vsel %vm843, %v790, -inf
    %v922 = vrot.slane %v921, 4
    %v923 = vmax.f32 %v921, %v922
    %v924 = vrot.slane %v923, 2
    %v925 = vmax.f32 %v923, %v924
    %v926 = vrot.slane %v925, 1
    %v927 = vmax.f32 %v925, %v926
    %v928 = vsel %vm843, %v791, -inf
    %v929 = vrot.slane %v928, 4
    %v930 = vmax.f32 %v928, %v929
    %v931 = vrot.slane %v930, 2
    %v932 = vmax.f32 %v930, %v931
    %v933 = vrot.slane %v932, 1
    %v934 = vmax.f32 %v932, %v933
    %v935 = vsel %vm843, %v792, -inf
    %v936 = vrot.slane %v935, 4
    %v937 = vmax.f32 %v935, %v936
    %v938 = vrot.slane %v937, 2
    %v939 = vmax.f32 %v937, %v938
    %v940 = vrot.slane %v939, 1
    %v941 = vmax.f32 %v939, %v940
    %v942 = vsel %vm843, %v793, -inf
    %v943 = vrot.slane %v942, 4
    %v944 = vmax.f32 %v942, %v943
    %v945 = vrot.slane %v944, 2
    %v946 = vmax.f32 %v944, %v945
    %v947 = vrot.slane %v946, 1
    %v948 = vmax.f32 %v946, %v947
    %v949 = vsel %vm843, %v794, -inf
    %v950 = vrot.slane %v949, 4
    %v951 = vmax.f32 %v949, %v950
    %v952 = vrot.slane %v951, 2
    %v953 = vmax.f32 %v951, %v952
    %v954 = vrot.slane %v953, 1
    %v955 = vmax.f32 %v953, %v954
    %v956 = vsel %vm843, %v795, -inf
    %v957 = vrot.slane %v956, 4
    %v958 = vmax.f32 %v956, %v957
    %v959 = vrot.slane %v958, 2
    %v960 = vmax.f32 %v958, %v959
    %v961 = vrot.slane %v960, 1
    %v962 = vmax.f32 %v960, %v961
    %v963 = vsel %vm843, %v796, -inf
    %v964 = vrot.slane %v963, 4
    %v965 = vmax.f32 %v963, %v964
    %v966 = vrot.slane %v965, 2
    %v967 = vmax.f32 %v965, %v966
    %v968 = vrot.slane %v967, 1
    %v969 = vmax.f32 %v967, %v968
    %v970 = vsel %vm843, %v797, -inf
    %v971 = vrot.slane %v970, 4
    %v972 = vmax.f32 %v970, %v971
    %v973 = vrot.slane %v972, 2
    %v974 = vmax.f32 %v972, %v973
    %v975 = vrot.slane %v974, 1
    %v976 = vmax.f32 %v974, %v975
    %v977 = vsel %vm843, %v798, -inf
    %v978 = vrot.slane %v977, 4
    %v979 = vmax.f32 %v977, %v978
    %v980 = vrot.slane %v979, 2
    %v981 = vmax.f32 %v979, %v980
    %v982 = vrot.slane %v981, 1
    %v983 = vmax.f32 %v981, %v982
    %v984 = vsel %vm843, %v799, -inf
    %v985 = vrot.slane %v984, 4
    %v986 = vmax.f32 %v984, %v985
    %v987 = vrot.slane %v986, 2
    %v988 = vmax.f32 %v986, %v987
    %v989 = vrot.slane %v988, 1
    %v990 = vmax.f32 %v988, %v989
    %v991 = vsel %vm843, %v800, -inf
    %v992 = vrot.slane %v991, 4
    %v993 = vmax.f32 %v991, %v992
    %v994 = vrot.slane %v993, 2
    %v995 = vmax.f32 %v993, %v994
    %v996 = vrot.slane %v995, 1
    %v997 = vmax.f32 %v995, %v996
    %v998 = vsel %vm843, %v801, -inf
    %v999 = vrot.slane %v998, 4
    %v1000 = vmax.f32 %v998, %v999
    %v1001 = vrot.slane %v1000, 2
    %v1002 = vmax.f32 %v1000, %v1001
    %v1003 = vrot.slane %v1002, 1
    %v1004 = vmax.f32 %v1002, %v1003
    %v1005 = vsel %vm843, %v802, -inf
    %v1006 = vrot.slane %v1005, 4
    %v1007 = vmax.f32 %v1005, %v1006
    %v1008 = vrot.slane %v1007, 2
    %v1009 = vmax.f32 %v1007, %v1008
    %v1010 = vrot.slane %v1009, 1
    %v1011 = vmax.f32 %v1009, %v1010
    %v1012 = vsel %vm843, %v803, -inf
    %v1013 = vrot.slane %v1012, 4
    %v1014 = vmax.f32 %v1012, %v1013
    %v1015 = vrot.slane %v1014, 2
    %v1016 = vmax.f32 %v1014, %v1015
    %v1017 = vrot.slane %v1016, 1
    %v1018 = vmax.f32 %v1016, %v1017
    %v1019 = vsel %vm843, %v804, -inf
    %v1020 = vrot.slane %v1019, 4
    %v1021 = vmax.f32 %v1019, %v1020
    %v1022 = vrot.slane %v1021, 2
    %v1023 = vmax.f32 %v1021, %v1022
    %v1024 = vrot.slane %v1023, 1
    %v1025 = vmax.f32 %v1023, %v1024
    %v1026 = vsel %vm843, %v805, -inf
    %v1027 = vrot.slane %v1026, 4
    %v1028 = vmax.f32 %v1026, %v1027
    %v1029 = vrot.slane %v1028, 2
    %v1030 = vmax.f32 %v1028, %v1029
    %v1031 = vrot.slane %v1030, 1
    %v1032 = vmax.f32 %v1030, %v1031
    %v1033 = vsel %vm843, %v806, -inf
    %v1034 = vrot.slane %v1033, 4
    %v1035 = vmax.f32 %v1033, %v1034
    %v1036 = vrot.slane %v1035, 2
    %v1037 = vmax.f32 %v1035, %v1036
    %v1038 = vrot.slane %v1037, 1
    %v1039 = vmax.f32 %v1037, %v1038
    %v1040 = vsel %vm843, %v807, -inf
    %v1041 = vrot.slane %v1040, 4
    %v1042 = vmax.f32 %v1040, %v1041
    %v1043 = vrot.slane %v1042, 2
    %v1044 = vmax.f32 %v1042, %v1043
    %v1045 = vrot.slane %v1044, 1
    %v1046 = vmax.f32 %v1044, %v1045
    %v1047 = vsel %vm843, %v808, -inf
    %v1048 = vrot.slane %v1047, 4
    %v1049 = vmax.f32 %v1047, %v1048
    %v1050 = vrot.slane %v1049, 2
    %v1051 = vmax.f32 %v1049, %v1050
    %v1052 = vrot.slane %v1051, 1
    %v1053 = vmax.f32 %v1051, %v1052
    %v1054 = vsel %vm843, %v809, -inf
    %v1055 = vrot.slane %v1054, 4
    %v1056 = vmax.f32 %v1054, %v1055
    %v1057 = vrot.slane %v1056, 2
    %v1058 = vmax.f32 %v1056, %v1057
    %v1059 = vrot.slane %v1058, 1
    %v1060 = vmax.f32 %v1058, %v1059
    %v1061 = vsel %vm843, %v810, -inf
    %v1062 = vrot.slane %v1061, 4
    %v1063 = vmax.f32 %v1061, %v1062
    %v1064 = vrot.slane %v1063, 2
    %v1065 = vmax.f32 %v1063, %v1064
    %v1066 = vrot.slane %v1065, 1
    %v1067 = vmax.f32 %v1065, %v1066
    %v1068 = vsel %vm843, %v811, -inf
    %v1069 = vrot.slane %v1068, 4
    %v1070 = vmax.f32 %v1068, %v1069
    %v1071 = vrot.slane %v1070, 2
    %v1072 = vmax.f32 %v1070, %v1071
    %v1073 = vrot.slane %v1072, 1
    %v1074 = vmax.f32 %v1072, %v1073
    %v1075 = vsel %vm843, %v812, -inf
    %v1076 = vrot.slane %v1075, 4
    %v1077 = vmax.f32 %v1075, %v1076
    %v1078 = vrot.slane %v1077, 2
    %v1079 = vmax.f32 %v1077, %v1078
    %v1080 = vrot.slane %v1079, 1
    %v1081 = vmax.f32 %v1079, %v1080
    %v1082 = vsel %vm843, %v813, -inf
    %v1083 = vrot.slane %v1082, 4
    %v1084 = vmax.f32 %v1082, %v1083
    %v1085 = vrot.slane %v1084, 2
    %v1086 = vmax.f32 %v1084, %v1085
    %v1087 = vrot.slane %v1086, 1
    %v1088 = vmax.f32 %v1086, %v1087
    %v1089 = vsel %vm843, %v814, -inf
    %v1090 = vrot.slane %v1089, 4
    %v1091 = vmax.f32 %v1089, %v1090
    %v1092 = vrot.slane %v1091, 2
    %v1093 = vmax.f32 %v1091, %v1092
    %v1094 = vrot.slane %v1093, 1
    %v1095 = vmax.f32 %v1093, %v1094
    %v1096 = vsel %vm843, %v815, -inf
    %v1097 = vrot.slane %v1096, 4
    %v1098 = vmax.f32 %v1096, %v1097
    %v1099 = vrot.slane %v1098, 2
    %v1100 = vmax.f32 %v1098, %v1099
    %v1101 = vrot.slane %v1100, 1
    %v1102 = vmax.f32 %v1100, %v1101
    %v1103 = vsel %vm843, %v816, -inf
    %v1104 = vrot.slane %v1103, 4
    %v1105 = vmax.f32 %v1103, %v1104
    %v1106 = vrot.slane %v1105, 2
    %v1107 = vmax.f32 %v1105, %v1106
    %v1108 = vrot.slane %v1107, 1
    %v1109 = vmax.f32 %v1107, %v1108
    %v1110 = vsel %vm843, %v817, -inf
    %v1111 = vrot.slane %v1110, 4
    %v1112 = vmax.f32 %v1110, %v1111
    %v1113 = vrot.slane %v1112, 2
    %v1114 = vmax.f32 %v1112, %v1113
    %v1115 = vrot.slane %v1114, 1
    %v1116 = vmax.f32 %v1114, %v1115
    %v1117 = vsel %vm843, %v818, -inf
    %v1118 = vrot.slane %v1117, 4
    %v1119 = vmax.f32 %v1117, %v1118
    %v1120 = vrot.slane %v1119, 2
    %v1121 = vmax.f32 %v1119, %v1120
    %v1122 = vrot.slane %v1121, 1
    %v1123 = vmax.f32 %v1121, %v1122
    %v1124 = vsel %vm843, %v819, -inf
    %v1125 = vrot.slane %v1124, 4
    %v1126 = vmax.f32 %v1124, %v1125
    %v1127 = vrot.slane %v1126, 2
    %v1128 = vmax.f32 %v1126, %v1127
    %v1129 = vrot.slane %v1128, 1
    %v1130 = vmax.f32 %v1128, %v1129
    %v1131 = vsel %vm843, %v820, -inf
    %v1132 = vrot.slane %v1131, 4
    %v1133 = vmax.f32 %v1131, %v1132
    %v1134 = vrot.slane %v1133, 2
    %v1135 = vmax.f32 %v1133, %v1134
    %v1136 = vrot.slane %v1135, 1
    %v1137 = vmax.f32 %v1135, %v1136
    %v1138 = vsel %vm843, %v821, -inf
    %v1139 = vrot.slane %v1138, 4
    %v1140 = vmax.f32 %v1138, %v1139
    %v1141 = vrot.slane %v1140, 2
    %v1142 = vmax.f32 %v1140, %v1141
    %v1143 = vrot.slane %v1142, 1
    %v1144 = vmax.f32 %v1142, %v1143
    %v1145 = vsel %vm843, %v822, -inf
    %v1146 = vrot.slane %v1145, 4
    %v1147 = vmax.f32 %v1145, %v1146
    %v1148 = vrot.slane %v1147, 2
    %v1149 = vmax.f32 %v1147, %v1148
    %v1150 = vrot.slane %v1149, 1
    %v1151 = vmax.f32 %v1149, %v1150
    %v1152 = vsel %vm843, %v823, -inf
    %v1153 = vrot.slane %v1152, 4
    %v1154 = vmax.f32 %v1152, %v1153
    %v1155 = vrot.slane %v1154, 2
    %v1156 = vmax.f32 %v1154, %v1155
    %v1157 = vrot.slane %v1156, 1
    %v1158 = vmax.f32 %v1156, %v1157
    %v1159 = vsel %vm843, %v824, -inf
    %v1160 = vrot.slane %v1159, 4
    %v1161 = vmax.f32 %v1159, %v1160
    %v1162 = vrot.slane %v1161, 2
    %v1163 = vmax.f32 %v1161, %v1162
    %v1164 = vrot.slane %v1163, 1
    %v1165 = vmax.f32 %v1163, %v1164
    %v1166 = vsel %vm843, %v825, -inf
    %v1167 = vrot.slane %v1166, 4
    %v1168 = vmax.f32 %v1166, %v1167
    %v1169 = vrot.slane %v1168, 2
    %v1170 = vmax.f32 %v1168, %v1169
    %v1171 = vrot.slane %v1170, 1
    %v1172 = vmax.f32 %v1170, %v1171
    %v1173 = vsel %vm843, %v826, -inf
    %v1174 = vrot.slane %v1173, 4
    %v1175 = vmax.f32 %v1173, %v1174
    %v1176 = vrot.slane %v1175, 2
    %v1177 = vmax.f32 %v1175, %v1176
    %v1178 = vrot.slane %v1177, 1
    %v1179 = vmax.f32 %v1177, %v1178
    %v1180 = vsel %vm843, %v827, -inf
    %v1181 = vrot.slane %v1180, 4
    %v1182 = vmax.f32 %v1180, %v1181
    %v1183 = vrot.slane %v1182, 2
    %v1184 = vmax.f32 %v1182, %v1183
    %v1185 = vrot.slane %v1184, 1
    %v1186 = vmax.f32 %v1184, %v1185
    %v1187 = vsel %vm843, %v828, -inf
    %v1188 = vrot.slane %v1187, 4
    %v1189 = vmax.f32 %v1187, %v1188
    %v1190 = vrot.slane %v1189, 2
    %v1191 = vmax.f32 %v1189, %v1190
    %v1192 = vrot.slane %v1191, 1
    %v1193 = vmax.f32 %v1191, %v1192
    %v1194 = vsel %vm843, %v829, -inf
    %v1195 = vrot.slane %v1194, 4
    %v1196 = vmax.f32 %v1194, %v1195
    %v1197 = vrot.slane %v1196, 2
    %v1198 = vmax.f32 %v1196, %v1197
    %v1199 = vrot.slane %v1198, 1
    %v1200 = vmax.f32 %v1198, %v1199
    %v1201 = vsel %vm843, %v830, -inf
    %v1202 = vrot.slane %v1201, 4
    %v1203 = vmax.f32 %v1201, %v1202
    %v1204 = vrot.slane %v1203, 2
    %v1205 = vmax.f32 %v1203, %v1204
    %v1206 = vrot.slane %v1205, 1
    %v1207 = vmax.f32 %v1205, %v1206
    %v1208 = vsel %vm843, %v831, -inf
    %v1209 = vrot.slane %v1208, 4
    %v1210 = vmax.f32 %v1208, %v1209
    %v1211 = vrot.slane %v1210, 2
    %v1212 = vmax.f32 %v1210, %v1211
    %v1213 = vrot.slane %v1212, 1
    %v1214 = vmax.f32 %v1212, %v1213
    %v1215 = vsel %vm843, %v832, -inf
    %v1216 = vrot.slane %v1215, 4
    %v1217 = vmax.f32 %v1215, %v1216
    %v1218 = vrot.slane %v1217, 2
    %v1219 = vmax.f32 %v1217, %v1218
    %v1220 = vrot.slane %v1219, 1
    %v1221 = vmax.f32 %v1219, %v1220
    %v1222 = vsel %vm843, %v833, -inf
    %v1223 = vrot.slane %v1222, 4
    %v1224 = vmax.f32 %v1222, %v1223
    %v1225 = vrot.slane %v1224, 2
    %v1226 = vmax.f32 %v1224, %v1225
    %v1227 = vrot.slane %v1226, 1
    %v1228 = vmax.f32 %v1226, %v1227
    %v1229 = vsel %vm843, %v834, -inf
    %v1230 = vrot.slane %v1229, 4
    %v1231 = vmax.f32 %v1229, %v1230
    %v1232 = vrot.slane %v1231, 2
    %v1233 = vmax.f32 %v1231, %v1232
    %v1234 = vrot.slane %v1233, 1
    %v1235 = vmax.f32 %v1233, %v1234
    %v1236 = vsel %vm843, %v835, -inf
    %v1237 = vrot.slane %v1236, 4
    %v1238 = vmax.f32 %v1236, %v1237
    %v1239 = vrot.slane %v1238, 2
    %v1240 = vmax.f32 %v1238, %v1239
    %v1241 = vrot.slane %v1240, 1
    %v1242 = vmax.f32 %v1240, %v1241
    %v1243 = vsel %vm843, %v836, -inf
    %v1244 = vrot.slane %v1243, 4
    %v1245 = vmax.f32 %v1243, %v1244
    %v1246 = vrot.slane %v1245, 2
    %v1247 = vmax.f32 %v1245, %v1246
    %v1248 = vrot.slane %v1247, 1
    %v1249 = vmax.f32 %v1247, %v1248
    %v1250 = vsel %vm843, %v837, -inf
    %v1251 = vrot.slane %v1250, 4
    %v1252 = vmax.f32 %v1250, %v1251
    %v1253 = vrot.slane %v1252, 2
    %v1254 = vmax.f32 %v1252, %v1253
    %v1255 = vrot.slane %v1254, 1
    %v1256 = vmax.f32 %v1254, %v1255
    %v1257 = vsel %vm843, %v838, -inf
    %v1258 = vrot.slane %v1257, 4
    %v1259 = vmax.f32 %v1257, %v1258
    %v1260 = vrot.slane %v1259, 2
    %v1261 = vmax.f32 %v1259, %v1260
    %v1262 = vrot.slane %v1261, 1
    %v1263 = vmax.f32 %v1261, %v1262
    %v1264 = vsel %vm843, %v839, -inf
    %v1265 = vrot.slane %v1264, 4
    %v1266 = vmax.f32 %v1264, %v1265
    %v1267 = vrot.slane %v1266, 2
    %v1268 = vmax.f32 %v1266, %v1267
    %v1269 = vrot.slane %v1268, 1
    %v1270 = vmax.f32 %v1268, %v1269
    %v1271 = vsel %vm843, %v840, -inf
    %v1272 = vrot.slane %v1271, 4
    %v1273 = vmax.f32 %v1271, %v1272
    %v1274 = vrot.slane %v1273, 2
    %v1275 = vmax.f32 %v1273, %v1274
    %v1276 = vrot.slane %v1275, 1
    %v1277 = vmax.f32 %v1275, %v1276
    %v1278 = vsel %vm843, %v841, -inf
    %v1279 = vrot.slane %v1278, 4
    %v1280 = vmax.f32 %v1278, %v1279
    %v1281 = vrot.slane %v1280, 2
    %v1282 = vmax.f32 %v1280, %v1281
    %v1283 = vrot.slane %v1282, 1
    %v1284 = vmax.f32 %v1282, %v1283
    %v1285 = vsel %vm843, %v842, -inf
    %v1286 = vrot.slane %v1285, 4
    %v1287 = vmax.f32 %v1285, %v1286
    %v1288 = vrot.slane %v1287, 2
    %v1289 = vmax.f32 %v1287, %v1288
    %v1290 = vrot.slane %v1289, 1
    %v1291 = vmax.f32 %v1289, %v1290
    %v1292 = vpack.c.bf16 %v850, %v850
    %v1293 = vpack.c.bf16 %v857, %v857
    %v1294 = vpack.c.bf16 %v864, %v864
    %v1295 = vpack.c.bf16 %v871, %v871
    %v1296 = vpack.c.bf16 %v878, %v878
    %v1297 = vpack.c.bf16 %v885, %v885
    %v1298 = vpack.c.bf16 %v892, %v892
    %v1299 = vpack.c.bf16 %v899, %v899
    %v1300 = vpack.c.bf16 %v906, %v906
    %v1301 = vpack.c.bf16 %v913, %v913
    %v1302 = vpack.c.bf16 %v920, %v920
    %v1303 = vpack.c.bf16 %v927, %v927
    %v1304 = vpack.c.bf16 %v934, %v934
    %v1305 = vpack.c.bf16 %v941, %v941
    %v1306 = vpack.c.bf16 %v948, %v948
    %v1307 = vpack.c.bf16 %v955, %v955
    %v1308 = vpack.c.bf16 %v962, %v962
    %v1309 = vpack.c.bf16 %v969, %v969
    %v1310 = vpack.c.bf16 %v976, %v976
    %v1311 = vpack.c.bf16 %v983, %v983
    %v1312 = vpack.c.bf16 %v990, %v990
    %v1313 = vpack.c.bf16 %v997, %v997
    %v1314 = vpack.c.bf16 %v1004, %v1004
    %v1315 = vpack.c.bf16 %v1011, %v1011
    %v1316 = vpack.c.bf16 %v1018, %v1018
    %v1317 = vpack.c.bf16 %v1025, %v1025
    %v1318 = vpack.c.bf16 %v1032, %v1032
    %v1319 = vpack.c.bf16 %v1039, %v1039
    %v1320 = vpack.c.bf16 %v1046, %v1046
    %v1321 = vpack.c.bf16 %v1053, %v1053
    %v1322 = vpack.c.bf16 %v1060, %v1060
    %v1323 = vpack.c.bf16 %v1067, %v1067
    %v1324 = vpack.c.bf16 %v1074, %v1074
    %v1325 = vpack.c.bf16 %v1081, %v1081
    %v1326 = vpack.c.bf16 %v1088, %v1088
    %v1327 = vpack.c.bf16 %v1095, %v1095
    %v1328 = vpack.c.bf16 %v1102, %v1102
    %v1329 = vpack.c.bf16 %v1109, %v1109
    %v1330 = vpack.c.bf16 %v1116, %v1116
    %v1331 = vpack.c.bf16 %v1123, %v1123
    %v1332 = vpack.c.bf16 %v1130, %v1130
    %v1333 = vpack.c.bf16 %v1137, %v1137
    %v1334 = vpack.c.bf16 %v1144, %v1144
    %v1335 = vpack.c.bf16 %v1151, %v1151
    %v1336 = vpack.c.bf16 %v1158, %v1158
    %v1337 = vpack.c.bf16 %v1165, %v1165
    %v1338 = vpack.c.bf16 %v1172, %v1172
    %v1339 = vpack.c.bf16 %v1179, %v1179
    %v1340 = vpack.c.bf16 %v1186, %v1186
    %v1341 = vpack.c.bf16 %v1193, %v1193
    %v1342 = vpack.c.bf16 %v1200, %v1200
    %v1343 = vpack.c.bf16 %v1207, %v1207
    %v1344 = vpack.c.bf16 %v1214, %v1214
    %v1345 = vpack.c.bf16 %v1221, %v1221
    %v1346 = vpack.c.bf16 %v1228, %v1228
    %v1347 = vpack.c.bf16 %v1235, %v1235
    %v1348 = vpack.c.bf16 %v1242, %v1242
    %v1349 = vpack.c.bf16 %v1249, %v1249
    %v1350 = vpack.c.bf16 %v1256, %v1256
    %v1351 = vpack.c.bf16 %v1263, %v1263
    %v1352 = vpack.c.bf16 %v1270, %v1270
    %v1353 = vpack.c.bf16 %v1277, %v1277
    %v1354 = vpack.c.bf16 %v1284, %v1284
    %v1355 = vpack.c.bf16 %v1291, %v1291
    %v1420 = vunpack.c.l.b16 %v1292
    %v1421 = vunpack.c.l.b16 %v1293
    %v1422 = vunpack.c.l.b16 %v1294
    %v1423 = vunpack.c.l.b16 %v1295
    %v1424 = vunpack.c.l.b16 %v1296
    %v1425 = vunpack.c.l.b16 %v1297
    %v1426 = vunpack.c.l.b16 %v1298
    %v1427 = vunpack.c.l.b16 %v1299
    %v1428 = vunpack.c.l.b16 %v1300
    %v1429 = vunpack.c.l.b16 %v1301
    %v1430 = vunpack.c.l.b16 %v1302
    %v1431 = vunpack.c.l.b16 %v1303
    %v1432 = vunpack.c.l.b16 %v1304
    %v1433 = vunpack.c.l.b16 %v1305
    %v1434 = vunpack.c.l.b16 %v1306
    %v1435 = vunpack.c.l.b16 %v1307
    %v1436 = vunpack.c.l.b16 %v1308
    %v1437 = vunpack.c.l.b16 %v1309
    %v1438 = vunpack.c.l.b16 %v1310
    %v1439 = vunpack.c.l.b16 %v1311
    %v1440 = vunpack.c.l.b16 %v1312
    %v1441 = vunpack.c.l.b16 %v1313
    %v1442 = vunpack.c.l.b16 %v1314
    %v1443 = vunpack.c.l.b16 %v1315
    %v1444 = vunpack.c.l.b16 %v1316
    %v1445 = vunpack.c.l.b16 %v1317
    %v1446 = vunpack.c.l.b16 %v1318
    %v1447 = vunpack.c.l.b16 %v1319
    %v1448 = vunpack.c.l.b16 %v1320
    %v1449 = vunpack.c.l.b16 %v1321
    %v1450 = vunpack.c.l.b16 %v1322
    %v1451 = vunpack.c.l.b16 %v1323
    %v1452 = vunpack.c.l.b16 %v1324
    %v1453 = vunpack.c.l.b16 %v1325
    %v1454 = vunpack.c.l.b16 %v1326
    %v1455 = vunpack.c.l.b16 %v1327
    %v1456 = vunpack.c.l.b16 %v1328
    %v1457 = vunpack.c.l.b16 %v1329
    %v1458 = vunpack.c.l.b16 %v1330
    %v1459 = vunpack.c.l.b16 %v1331
    %v1460 = vunpack.c.l.b16 %v1332
    %v1461 = vunpack.c.l.b16 %v1333
    %v1462 = vunpack.c.l.b16 %v1334
    %v1463 = vunpack.c.l.b16 %v1335
    %v1464 = vunpack.c.l.b16 %v1336
    %v1465 = vunpack.c.l.b16 %v1337
    %v1466 = vunpack.c.l.b16 %v1338
    %v1467 = vunpack.c.l.b16 %v1339
    %v1468 = vunpack.c.l.b16 %v1340
    %v1469 = vunpack.c.l.b16 %v1341
    %v1470 = vunpack.c.l.b16 %v1342
    %v1471 = vunpack.c.l.b16 %v1343
    %v1472 = vunpack.c.l.b16 %v1344
    %v1473 = vunpack.c.l.b16 %v1345
    %v1474 = vunpack.c.l.b16 %v1346
    %v1475 = vunpack.c.l.b16 %v1347
    %v1476 = vunpack.c.l.b16 %v1348
    %v1477 = vunpack.c.l.b16 %v1349
    %v1478 = vunpack.c.l.b16 %v1350
    %v1479 = vunpack.c.l.b16 %v1351
    %v1480 = vunpack.c.l.b16 %v1352
    %v1481 = vunpack.c.l.b16 %v1353
    %v1482 = vunpack.c.l.b16 %v1354
    %v1483 = vunpack.c.l.b16 %v1355
    %v1484 = vpack.c.b16 %v1420, %v1420
    %v1485 = vpack.c.b16 %v1421, %v1421
    %v1486 = vpack.c.b16 %v1422, %v1422
    %v1487 = vpack.c.b16 %v1423, %v1423
    %v1488 = vpack.c.b16 %v1424, %v1424
    %v1489 = vpack.c.b16 %v1425, %v1425
    %v1490 = vpack.c.b16 %v1426, %v1426
    %v1491 = vpack.c.b16 %v1427, %v1427
    %v1492 = vpack.c.b16 %v1428, %v1428
    %v1493 = vpack.c.b16 %v1429, %v1429
    %v1494 = vpack.c.b16 %v1430, %v1430
    %v1495 = vpack.c.b16 %v1431, %v1431
    %v1496 = vpack.c.b16 %v1432, %v1432
    %v1497 = vpack.c.b16 %v1433, %v1433
    %v1498 = vpack.c.b16 %v1434, %v1434
    %v1499 = vpack.c.b16 %v1435, %v1435
    %v1500 = vpack.c.b16 %v1436, %v1436
    %v1501 = vpack.c.b16 %v1437, %v1437
    %v1502 = vpack.c.b16 %v1438, %v1438
    %v1503 = vpack.c.b16 %v1439, %v1439
    %v1504 = vpack.c.b16 %v1440, %v1440
    %v1505 = vpack.c.b16 %v1441, %v1441
    %v1506 = vpack.c.b16 %v1442, %v1442
    %v1507 = vpack.c.b16 %v1443, %v1443
    %v1508 = vpack.c.b16 %v1444, %v1444
    %v1509 = vpack.c.b16 %v1445, %v1445
    %v1510 = vpack.c.b16 %v1446, %v1446
    %v1511 = vpack.c.b16 %v1447, %v1447
    %v1512 = vpack.c.b16 %v1448, %v1448
    %v1513 = vpack.c.b16 %v1449, %v1449
    %v1514 = vpack.c.b16 %v1450, %v1450
    %v1515 = vpack.c.b16 %v1451, %v1451
    %v1516 = vpack.c.b16 %v1452, %v1452
    %v1517 = vpack.c.b16 %v1453, %v1453
    %v1518 = vpack.c.b16 %v1454, %v1454
    %v1519 = vpack.c.b16 %v1455, %v1455
    %v1520 = vpack.c.b16 %v1456, %v1456
    %v1521 = vpack.c.b16 %v1457, %v1457
    %v1522 = vpack.c.b16 %v1458, %v1458
    %v1523 = vpack.c.b16 %v1459, %v1459
    %v1524 = vpack.c.b16 %v1460, %v1460
    %v1525 = vpack.c.b16 %v1461, %v1461
    %v1526 = vpack.c.b16 %v1462, %v1462
    %v1527 = vpack.c.b16 %v1463, %v1463
    %v1528 = vpack.c.b16 %v1464, %v1464
    %v1529 = vpack.c.b16 %v1465, %v1465
    %v1530 = vpack.c.b16 %v1466, %v1466
    %v1531 = vpack.c.b16 %v1467, %v1467
    %v1532 = vpack.c.b16 %v1468, %v1468
    %v1533 = vpack.c.b16 %v1469, %v1469
    %v1534 = vpack.c.b16 %v1470, %v1470
    %v1535 = vpack.c.b16 %v1471, %v1471
    %v1536 = vpack.c.b16 %v1472, %v1472
    %v1537 = vpack.c.b16 %v1473, %v1473
    %v1538 = vpack.c.b16 %v1474, %v1474
    %v1539 = vpack.c.b16 %v1475, %v1475
    %v1540 = vpack.c.b16 %v1476, %v1476
    %v1541 = vpack.c.b16 %v1477, %v1477
    %v1542 = vpack.c.b16 %v1478, %v1478
    %v1543 = vpack.c.b16 %v1479, %v1479
    %v1544 = vpack.c.b16 %v1480, %v1480
    %v1545 = vpack.c.b16 %v1481, %v1481
    %v1546 = vpack.c.b16 %v1482, %v1482
    %v1547 = vpack.c.b16 %v1483, %v1483
    %v1548 = vunpack.c.l.b16 %v1484
    %v1549 = vunpack.c.l.b16 %v1485
    %v1550 = vunpack.c.l.b16 %v1486
    %v1551 = vunpack.c.l.b16 %v1487
    %v1552 = vunpack.c.l.b16 %v1488
    %v1553 = vunpack.c.l.b16 %v1489
    %v1554 = vunpack.c.l.b16 %v1490
    %v1555 = vunpack.c.l.b16 %v1491
    %v1556 = vunpack.c.l.b16 %v1492
    %v1557 = vunpack.c.l.b16 %v1493
    %v1558 = vunpack.c.l.b16 %v1494
    %v1559 = vunpack.c.l.b16 %v1495
    %v1560 = vunpack.c.l.b16 %v1496
    %v1561 = vunpack.c.l.b16 %v1497
    %v1562 = vunpack.c.l.b16 %v1498
    %v1563 = vunpack.c.l.b16 %v1499
    %v1564 = vunpack.c.l.b16 %v1500
    %v1565 = vunpack.c.l.b16 %v1501
    %v1566 = vunpack.c.l.b16 %v1502
    %v1567 = vunpack.c.l.b16 %v1503
    %v1568 = vunpack.c.l.b16 %v1504
    %v1569 = vunpack.c.l.b16 %v1505
    %v1570 = vunpack.c.l.b16 %v1506
    %v1571 = vunpack.c.l.b16 %v1507
    %v1572 = vunpack.c.l.b16 %v1508
    %v1573 = vunpack.c.l.b16 %v1509
    %v1574 = vunpack.c.l.b16 %v1510
    %v1575 = vunpack.c.l.b16 %v1511
    %v1576 = vunpack.c.l.b16 %v1512
    %v1577 = vunpack.c.l.b16 %v1513
    %v1578 = vunpack.c.l.b16 %v1514
    %v1579 = vunpack.c.l.b16 %v1515
    %v1580 = vunpack.c.l.b16 %v1516
    %v1581 = vunpack.c.l.b16 %v1517
    %v1582 = vunpack.c.l.b16 %v1518
    %v1583 = vunpack.c.l.b16 %v1519
    %v1584 = vunpack.c.l.b16 %v1520
    %v1585 = vunpack.c.l.b16 %v1521
    %v1586 = vunpack.c.l.b16 %v1522
    %v1587 = vunpack.c.l.b16 %v1523
    %v1588 = vunpack.c.l.b16 %v1524
    %v1589 = vunpack.c.l.b16 %v1525
    %v1590 = vunpack.c.l.b16 %v1526
    %v1591 = vunpack.c.l.b16 %v1527
    %v1592 = vunpack.c.l.b16 %v1528
    %v1593 = vunpack.c.l.b16 %v1529
    %v1594 = vunpack.c.l.b16 %v1530
    %v1595 = vunpack.c.l.b16 %v1531
    %v1596 = vunpack.c.l.b16 %v1532
    %v1597 = vunpack.c.l.b16 %v1533
    %v1598 = vunpack.c.l.b16 %v1534
    %v1599 = vunpack.c.l.b16 %v1535
    %v1600 = vunpack.c.l.b16 %v1536
    %v1601 = vunpack.c.l.b16 %v1537
    %v1602 = vunpack.c.l.b16 %v1538
    %v1603 = vunpack.c.l.b16 %v1539
    %v1604 = vunpack.c.l.b16 %v1540
    %v1605 = vunpack.c.l.b16 %v1541
    %v1606 = vunpack.c.l.b16 %v1542
    %v1607 = vunpack.c.l.b16 %v1543
    %v1608 = vunpack.c.l.b16 %v1544
    %v1609 = vunpack.c.l.b16 %v1545
    %v1610 = vunpack.c.l.b16 %v1546
    %v1611 = vunpack.c.l.b16 %v1547
    %vm1612 = vcmask 1041409
    %v1613 = vsel %vm1612, %v1549, %v1548
    %vm1614 = vcmask 1042434
    %v1615 = vsel %vm1614, %v1550, %v1613
    %vm1616 = vcmask 1043459
    %v1617 = vsel %vm1616, %v1551, %v1615
    %vm1618 = vcmask 1044484
    %v1619 = vsel %vm1618, %v1552, %v1617
    %vm1620 = vcmask 1045509
    %v1621 = vsel %vm1620, %v1553, %v1619
    %vm1622 = vcmask 1046534
    %v1623 = vsel %vm1622, %v1554, %v1621
    %vm1624 = vcmask 1047559
    %v1625 = vsel %vm1624, %v1555, %v1623
    %v1626 = vsel %vm1612, %v1557, %v1556
    %v1627 = vsel %vm1614, %v1558, %v1626
    %v1628 = vsel %vm1616, %v1559, %v1627
    %v1629 = vsel %vm1618, %v1560, %v1628
    %v1630 = vsel %vm1620, %v1561, %v1629
    %v1631 = vsel %vm1622, %v1562, %v1630
    %v1632 = vsel %vm1624, %v1563, %v1631
    %v1633 = vsel %vm1612, %v1565, %v1564
    %v1634 = vsel %vm1614, %v1566, %v1633
    %v1635 = vsel %vm1616, %v1567, %v1634
    %v1636 = vsel %vm1618, %v1568, %v1635
    %v1637 = vsel %vm1620, %v1569, %v1636
    %v1638 = vsel %vm1622, %v1570, %v1637
    %v1639 = vsel %vm1624, %v1571, %v1638
    %v1640 = vsel %vm1612, %v1573, %v1572
    %v1641 = vsel %vm1614, %v1574, %v1640
    %v1642 = vsel %vm1616, %v1575, %v1641
    %v1643 = vsel %vm1618, %v1576, %v1642
    %v1644 = vsel %vm1620, %v1577, %v1643
    %v1645 = vsel %vm1622, %v1578, %v1644
    %v1646 = vsel %vm1624, %v1579, %v1645
    %v1647 = vsel %vm1612, %v1581, %v1580
    %v1648 = vsel %vm1614, %v1582, %v1647
    %v1649 = vsel %vm1616, %v1583, %v1648
    %v1650 = vsel %vm1618, %v1584, %v1649
    %v1651 = vsel %vm1620, %v1585, %v1650
    %v1652 = vsel %vm1622, %v1586, %v1651
    %v1653 = vsel %vm1624, %v1587, %v1652
    %v1654 = vsel %vm1612, %v1589, %v1588
    %v1655 = vsel %vm1614, %v1590, %v1654
    %v1656 = vsel %vm1616, %v1591, %v1655
    %v1657 = vsel %vm1618, %v1592, %v1656
    %v1658 = vsel %vm1620, %v1593, %v1657
    %v1659 = vsel %vm1622, %v1594, %v1658
    %v1660 = vsel %vm1624, %v1595, %v1659
    %v1661 = vsel %vm1612, %v1597, %v1596
    %v1662 = vsel %vm1614, %v1598, %v1661
    %v1663 = vsel %vm1616, %v1599, %v1662
    %v1664 = vsel %vm1618, %v1600, %v1663
    %v1665 = vsel %vm1620, %v1601, %v1664
    %v1666 = vsel %vm1622, %v1602, %v1665
    %v1667 = vsel %vm1624, %v1603, %v1666
    %v1668 = vsel %vm1612, %v1605, %v1604
    %v1669 = vsel %vm1614, %v1606, %v1668
    %v1670 = vsel %vm1616, %v1607, %v1669
    %v1671 = vsel %vm1618, %v1608, %v1670
    %v1672 = vsel %vm1620, %v1609, %v1671
    %v1673 = vsel %vm1622, %v1610, %v1672
    %v1674 = vsel %vm1624, %v1611, %v1673
    %v1675 = vpack.c.b16 %v1625, %v1625
    %v1676 = vpack.c.b16 %v1632, %v1632
    %v1677 = vpack.c.b16 %v1639, %v1639
    %v1678 = vpack.c.b16 %v1646, %v1646
    %v1679 = vpack.c.b16 %v1653, %v1653
    %v1680 = vpack.c.b16 %v1660, %v1660
    %v1681 = vpack.c.b16 %v1667, %v1667
    %v1682 = vpack.c.b16 %v1674, %v1674
    %vm1691 = vcmask 519168
    %1692 = vst.msk [vmem:[#allocation2] sm:$0xf] %vm1691, %v1675
    %1693 = vst.msk [vmem:[#allocation2 + $0x4] sm:$0xf] %vm1691, %v1676
    %1694 = vst.msk [vmem:[#allocation2 + $0x8] sm:$0xf] %vm1691, %v1677
    %1695 = vst.msk [vmem:[#allocation2 + $0xc] sm:$0xf] %vm1691, %v1678
    %1696 = vst.msk [vmem:[#allocation2 + $0x10] sm:$0xf] %vm1691, %v1679
    %1697 = vst.msk [vmem:[#allocation2 + $0x14] sm:$0xf] %vm1691, %v1680
    %1698 = vst.msk [vmem:[#allocation2 + $0x18] sm:$0xf] %vm1691, %v1681
    %1699 = vst.msk [vmem:[#allocation2 + $0x1c] sm:$0xf] %vm1691, %v1682
    // Predicated region
    $region18: #{tpu_custom_call.1} parent=1 // pred_check
      _
    $region19: #{tpu_custom_call.1} parent=1 // pred_check_branch
      %1701 = sbr.rel (0) target = $region21
    $region20: #{tpu_custom_call.1} parent=1 // pred_region
      %s1703 = ssub.s32 512, 512
      %1704 = vsyncadd [#allocation3], %s1703
      %s1705 = sshll.u32 [#allocation2], 4
      %s1706 = int_to_ptr.vmem [resolvable:$true] %s1705
      %1711 = dma.vmem_to_hbm [thread:$0]  %s1706, 512, %s4, [#allocation3], 64, 64, 4
    $region21: #{tpu_custom_call.1} parent=1 // pred_fallthru
      _
    // Predicated region
    $region22: #{tpu_custom_call.1} parent=1 // pred_check
      _
    $region23: #{tpu_custom_call.1} parent=1 // pred_check_branch
      %1713 = sbr.rel (0) target = $region25
    $region24: #{tpu_custom_call.1} parent=1 // pred_region
      %1714 = dma.done [#allocation3], 512
    $region25: #{tpu_custom_call.1} parent=1 // pred_fallthru
      _
    %1715 = vsyncpa [#allocation3], 1

</llo_original>
